<compile_context>
chip_gen: v7x
topology: tpu7x:2x2x1
jax: 0.10.0
libtpu: 0.0.40
codegen_flags: <defaults>
</compile_context>

<pallas_src>
import math

import jax
import jax.numpy as jnp
from jax.experimental import pallas as pl
from jax.experimental.pallas import tpu as pltpu

IN_FEATURES = 512
OUT_FEATURES = 10
DEFAULT_TILE_B = 4096       # max batch tile; shrunk for small batches
VMEM_LIMIT_BYTES = 40 << 20  # explicit scoped-VMEM limit (safe on v5e/v6e/v7x)


def _round_up(n, m):
    return ((n + m - 1) // m) * m


def _linear_kernel(x_ref, w_ref, b_ref, o_ref):
    # x_ref: (TILE_B, 512)  w_ref: (512, 10)  b_ref: (1, 10)  o_ref: (TILE_B, 10)
    x = x_ref[...]
    if x.dtype != jnp.float32:
        x = x.astype(jnp.float32)   # upcast in-kernel; no wrapper HBM pass
    acc = jnp.dot(
        x,
        w_ref[...],
        preferred_element_type=jnp.float32,
        precision=jax.lax.Precision.HIGHEST,
    )
    o_ref[...] = acc + b_ref[...]


def top_model_forward(x, w_t, b, *, tile_b=DEFAULT_TILE_B):
    """Reproduces TopModel.forward: self._model(x.squeeze()).

    x   : any shape that flattens to (B, 512)   (f32 or bf16)
    w_t : (512, 10)  -- transposed nn.Linear weight
    b   : (10,)      -- nn.Linear bias
    returns (B, 10) float32
    """
    # Equivalent of `.squeeze()` for the intended (B, 1, 512) layout, but
    # robust to batch == 1 (a blanket squeeze would drop the batch dim).
    x2d = x.reshape(-1, IN_FEATURES)
    batch = x2d.shape[0]

    w2d = w_t.astype(jnp.float32)
    b2d = b.reshape(1, OUT_FEATURES).astype(jnp.float32)

    # Batch tile: multiple of 8 (sublane), capped at tile_b.  For batches big
    # enough to split, also cap at ~ceil(batch/2) so the parallel grid axis
    # has >= 2 steps and both v7x TensorCores are used.
    tile_b = min(tile_b, _round_up(batch, 8))
    if batch >= 16:
        tile_b = min(tile_b, _round_up(pl.cdiv(batch, 2), 8))
    tile_b = max(tile_b, 8)

    grid = (pl.cdiv(batch, tile_b),)

    x_bytes = jnp.dtype(x2d.dtype).itemsize
    cost = pl.CostEstimate(
        flops=2 * batch * IN_FEATURES * OUT_FEATURES,
        transcendentals=0,
        bytes_accessed=(
            batch * IN_FEATURES * x_bytes          # x
            + batch * OUT_FEATURES * 4             # y
            + IN_FEATURES * OUT_FEATURES * 4       # weight
            + OUT_FEATURES * 4                     # bias
        ),
    )

    y = pl.pallas_call(
        _linear_kernel,
        out_shape=jax.ShapeDtypeStruct((batch, OUT_FEATURES), jnp.float32),
        grid_spec=pltpu.PrefetchScalarGridSpec(
            num_scalar_prefetch=0,
            grid=grid,
            in_specs=[
                pl.BlockSpec((tile_b, IN_FEATURES), lambda i: (i, 0)),
                pl.BlockSpec((IN_FEATURES, OUT_FEATURES), lambda i: (0, 0)),
                pl.BlockSpec((1, OUT_FEATURES), lambda i: (0, 0)),
            ],
            out_specs=pl.BlockSpec((tile_b, OUT_FEATURES), lambda i: (i, 0)),
        ),
        compiler_params=pltpu.CompilerParams(
            dimension_semantics=("parallel",),
            vmem_limit_bytes=VMEM_LIMIT_BYTES,
        ),
        cost_estimate=cost,
    )(x2d, w2d, b2d)

    return y


def init_params(key):
    """Deterministic init matching nn.Linear default: U(-1/sqrt(in), 1/sqrt(in))."""
    kw, kb = jax.random.split(key)
    bound = 1.0 / math.sqrt(IN_FEATURES)
    # PyTorch weight is (out, in); store transposed (in, out) for the kernel.
    w = jax.random.uniform(
        kw, (OUT_FEATURES, IN_FEATURES), jnp.float32, -bound, bound
    )
    b = jax.random.uniform(kb, (OUT_FEATURES,), jnp.float32, -bound, bound)
    return w.T, b


def _reference(x, w_t, b):
    x2d = x.reshape(-1, IN_FEATURES).astype(jnp.float32)
    return (
        jnp.dot(x2d, w_t, precision=jax.lax.Precision.HIGHEST)
        + b.reshape(1, OUT_FEATURES)
    )


if __name__ == "__main__":
    key = jax.random.PRNGKey(0)
    k_x, k_x2, k_x3, k_p = jax.random.split(key, 4)

    w_t, b = init_params(k_p)

    # Case 1: tile-aligned small batch with the squeezable singleton dim.
    batch = 8
    x = jax.random.normal(k_x, (batch, 1, IN_FEATURES), jnp.float32)
    y = jax.block_until_ready(top_model_forward(x, w_t, b))
    assert y.shape == (batch, OUT_FEATURES)
    assert jnp.allclose(y, _reference(x, w_t, b), atol=1e-5, rtol=1e-5)

    # Case 2: batch not a multiple of 8 (partial-block masked writeback).
    batch2 = 5
    x2 = jax.random.normal(k_x2, (batch2, 1, IN_FEATURES), jnp.float32)
    y2 = jax.block_until_ready(top_model_forward(x2, w_t, b))
    assert y2.shape == (batch2, OUT_FEATURES)
    assert jnp.allclose(y2, _reference(x2, w_t, b), atol=1e-5, rtol=1e-5)

    # Case 3: multi-step grid with a partial last tile (megacore split path).
    batch3 = 33
    x3 = jax.random.normal(k_x3, (batch3, 1, IN_FEATURES), jnp.float32)
    y3 = jax.block_until_ready(top_model_forward(x3, w_t, b))
    assert y3.shape == (batch3, OUT_FEATURES)
    assert jnp.allclose(y3, _reference(x3, w_t, b), atol=1e-5, rtol=1e-5)

    print("KERNEL_OK")
</pallas_src>

<mosaic_0001>
module attributes {stable_mosaic.version = 11 : i64} {
  func.func @_linear_kernel(%arg0: i32, %arg1: memref<8x512xf32, #tpu.memory_space<vmem>>, %arg2: memref<512x10xf32, #tpu.memory_space<vmem>>, %arg3: memref<1x10xf32, #tpu.memory_space<vmem>>, %arg4: memref<8x10xf32, #tpu.memory_space<vmem>>) attributes {dimension_semantics = [#tpu.dimension_semantics<parallel>], iteration_bounds = array<i64: 1>, scalar_prefetch = 0 : i64, scratch_operands = 0 : i64, tpu.core_type = #tpu.core_type<tc>, window_params = [{transform_indices = @transform_0, window_bounds = array<i64: 8, 512>}, {pipeline_mode = #tpu.pipeline_mode<synchronous>, transform_indices = @transform_1, window_bounds = array<i64: 512, 10>}, {pipeline_mode = #tpu.pipeline_mode<synchronous>, transform_indices = @transform_2, window_bounds = array<i64: 1, 10>}, {transform_indices = @transform_3, window_bounds = array<i64: 8, 10>}]} {
    %c0 = arith.constant 0 : index
    %c0_0 = arith.constant 0 : index
    %0 = vector.load %arg1[%c0, %c0_0] : memref<8x512xf32, #tpu.memory_space<vmem>>, vector<8x512xf32>
    %c0_1 = arith.constant 0 : index
    %c0_2 = arith.constant 0 : index
    %1 = vector.load %arg2[%c0_1, %c0_2] : memref<512x10xf32, #tpu.memory_space<vmem>>, vector<512x10xf32>
    %cst = arith.constant dense<0.000000e+00> : vector<8x10xf32>
    %2 = tpu.matmul %0, %1, %cst {dimension_numbers = #tpu.dot_dimension_numbers<[1], [0], [0], [1], [0, 0, 1, 1], [], []>, precision = #tpu.contract_precision<fp32>} : vector<8x512xf32>, vector<512x10xf32>, vector<8x10xf32> -> vector<8x10xf32>
    %c0_3 = arith.constant 0 : index
    %c0_4 = arith.constant 0 : index
    %3 = vector.load %arg3[%c0_3, %c0_4] : memref<1x10xf32, #tpu.memory_space<vmem>>, vector<1x10xf32>
    %4 = vector.broadcast %3 : vector<1x10xf32> to vector<8x10xf32>
    %5 = arith.addf %2, %4 : vector<8x10xf32>
    %c0_5 = arith.constant 0 : index
    %c0_6 = arith.constant 0 : index
    %6 = vector.load %arg4[%c0_5, %c0_6] : memref<8x10xf32, #tpu.memory_space<vmem>>, vector<8x10xf32>
    tpu.vector_store %arg4[%c0_5, %c0_6], %5 {strides = array<i32>} : memref<8x10xf32, #tpu.memory_space<vmem>>, vector<8x10xf32>,
    return
  }
  func.func @transform_0(%arg0: i32) -> (i32, i32) {
    %c0_i32 = arith.constant 0 : i32
    %c0_i32_0 = arith.constant 0 : i32
    return %arg0, %c0_i32 : i32, i32
  }
  func.func @transform_1(%arg0: i32) -> (i32, i32) {
    %c0_i32 = arith.constant 0 : i32
    %c0_i32_0 = arith.constant 0 : i32
    %c0_i32_1 = arith.constant 0 : i32
    return %c0_i32, %c0_i32_0 : i32, i32
  }
  func.func @transform_2(%arg0: i32) -> (i32, i32) {
    %c0_i32 = arith.constant 0 : i32
    %c0_i32_0 = arith.constant 0 : i32
    %c0_i32_1 = arith.constant 0 : i32
    return %c0_i32, %c0_i32_0 : i32, i32
  }
  func.func @transform_3(%arg0: i32) -> (i32, i32) {
    %c0_i32 = arith.constant 0 : i32
    %c0_i32_0 = arith.constant 0 : i32
    return %arg0, %c0_i32 : i32, i32
  }
}

</mosaic_0001>

<llo_original>
// kernel: tpu_custom_call.1
$region0: #{tpu_custom_call.1}
  #allocation0 [shape = 'u32[]', space=smem, size = 0x4, offset = 0x4, fixed_abs, tag = 'smem constant byte address 0x4 - core index']
  #allocation1 [shape = 'u32[144,128]{1,0:T(1,128)}', space=vmem, size = 0x12000, scoped, tag = 'internal scratch']
  %s0 = inlined_call_operand.vmem [shape: f32[8,512], index: 0, kind: input, shape index: {}]
  %s1 = inlined_call_operand.vmem [shape: f32[512,10], index: 1, kind: input, shape index: {}]
  %s2 = inlined_call_operand.vmem [shape: f32[1,10], index: 2, kind: input, shape index: {}]
  %s3 = inlined_call_operand.hbm [shape: f32[8,10], index: 3, kind: output, shape index: {}]
  %s4 = sld [smem:[#allocation0]]
  $region22: #{tpu_custom_call.1} parent=0
    _
  %s6 = ssub.s32 1, %s4
  %s7 = scalar_select 0, %s6, %s4
  $region1: #{tpu_custom_call.1} parent=0
    #allocation2 [shape = 'u8[4096]{0}', space=vmem, size = 0x1000, scoped, tag = 'output window, operand 0, single buffered']
    #allocation3 [shape = 's32[1]{0}', space=sflag, size = 0x4, scoped, tag = 'scoped memory for tpu_custom_call.1']
    %8 = vsyncpa [#allocation3], 0
    // Predicated region
    $region2: #{tpu_custom_call.1} parent=1 // pred_check
      _
    $region3: #{tpu_custom_call.1} parent=1 // pred_check_branch
      %10 = sbr.rel (0) target = $region5
    $region4: #{tpu_custom_call.1} parent=1 // pred_region
      _
    $region5: #{tpu_custom_call.1} parent=1 // pred_fallthru
      _
    // Predicated region
    $region6: #{tpu_custom_call.1} parent=1 // pred_check
      _
    $region7: #{tpu_custom_call.1} parent=1 // pred_check_branch
      %12 = sbr.rel (0) target = $region9
    $region8: #{tpu_custom_call.1} parent=1 // pred_region
      _
    $region9: #{tpu_custom_call.1} parent=1 // pred_fallthru
      _
    // Predicated region
    $region10: #{tpu_custom_call.1} parent=1 // pred_check
      _
    $region11: #{tpu_custom_call.1} parent=1 // pred_check_branch
      %14 = sbr.rel (0) target = $region13
    $region12: #{tpu_custom_call.1} parent=1 // pred_region
      _
    $region13: #{tpu_custom_call.1} parent=1 // pred_fallthru
      _
    %v15 = vld [vmem:[%s0] sm:$0xff]
    %v16 = vld [vmem:[%s0 + $0x8] sm:$0xff]
    %v17 = vld [vmem:[%s0 + $0x10] sm:$0xff]
    %v18 = vld [vmem:[%s0 + $0x18] sm:$0xff]
    %v19 = vld [vmem:[%s1] sm:$0xff]
    %v20 = vld [vmem:[%s1 + $0x8] sm:$0xff]
    %v21 = vld [vmem:[%s1 + $0x10] sm:$0xff]
    %v22 = vld [vmem:[%s1 + $0x18] sm:$0xff]
    %v23 = vld [vmem:[%s1 + $0x20] sm:$0xff]
    %v24 = vld [vmem:[%s1 + $0x28] sm:$0xff]
    %v25 = vld [vmem:[%s1 + $0x30] sm:$0xff]
    %v26 = vld [vmem:[%s1 + $0x38] sm:$0xff]
    %v27 = vld [vmem:[%s1 + $0x40] sm:$0xff]
    %v28 = vld [vmem:[%s1 + $0x48] sm:$0xff]
    %v29 = vld [vmem:[%s1 + $0x50] sm:$0xff]
    %v30 = vld [vmem:[%s1 + $0x58] sm:$0xff]
    %v31 = vld [vmem:[%s1 + $0x60] sm:$0xff]
    %v32 = vld [vmem:[%s1 + $0x68] sm:$0xff]
    %v33 = vld [vmem:[%s1 + $0x70] sm:$0xff]
    %v34 = vld [vmem:[%s1 + $0x78] sm:$0xff]
    %v35 = vld [vmem:[%s1 + $0x80] sm:$0xff]
    %v36 = vld [vmem:[%s1 + $0x88] sm:$0xff]
    %v37 = vld [vmem:[%s1 + $0x90] sm:$0xff]
    %v38 = vld [vmem:[%s1 + $0x98] sm:$0xff]
    %v39 = vld [vmem:[%s1 + $0xa0] sm:$0xff]
    %v40 = vld [vmem:[%s1 + $0xa8] sm:$0xff]
    %v41 = vld [vmem:[%s1 + $0xb0] sm:$0xff]
    %v42 = vld [vmem:[%s1 + $0xb8] sm:$0xff]
    %v43 = vld [vmem:[%s1 + $0xc0] sm:$0xff]
    %v44 = vld [vmem:[%s1 + $0xc8] sm:$0xff]
    %v45 = vld [vmem:[%s1 + $0xd0] sm:$0xff]
    %v46 = vld [vmem:[%s1 + $0xd8] sm:$0xff]
    %v47 = vld [vmem:[%s1 + $0xe0] sm:$0xff]
    %v48 = vld [vmem:[%s1 + $0xe8] sm:$0xff]
    %v49 = vld [vmem:[%s1 + $0xf0] sm:$0xff]
    %v50 = vld [vmem:[%s1 + $0xf8] sm:$0xff]
    %v51 = vld [vmem:[%s1 + $0x100] sm:$0xff]
    %v52 = vld [vmem:[%s1 + $0x108] sm:$0xff]
    %v53 = vld [vmem:[%s1 + $0x110] sm:$0xff]
    %v54 = vld [vmem:[%s1 + $0x118] sm:$0xff]
    %v55 = vld [vmem:[%s1 + $0x120] sm:$0xff]
    %v56 = vld [vmem:[%s1 + $0x128] sm:$0xff]
    %v57 = vld [vmem:[%s1 + $0x130] sm:$0xff]
    %v58 = vld [vmem:[%s1 + $0x138] sm:$0xff]
    %v59 = vld [vmem:[%s1 + $0x140] sm:$0xff]
    %v60 = vld [vmem:[%s1 + $0x148] sm:$0xff]
    %v61 = vld [vmem:[%s1 + $0x150] sm:$0xff]
    %v62 = vld [vmem:[%s1 + $0x158] sm:$0xff]
    %v63 = vld [vmem:[%s1 + $0x160] sm:$0xff]
    %v64 = vld [vmem:[%s1 + $0x168] sm:$0xff]
    %v65 = vld [vmem:[%s1 + $0x170] sm:$0xff]
    %v66 = vld [vmem:[%s1 + $0x178] sm:$0xff]
    %v67 = vld [vmem:[%s1 + $0x180] sm:$0xff]
    %v68 = vld [vmem:[%s1 + $0x188] sm:$0xff]
    %v69 = vld [vmem:[%s1 + $0x190] sm:$0xff]
    %v70 = vld [vmem:[%s1 + $0x198] sm:$0xff]
    %v71 = vld [vmem:[%s1 + $0x1a0] sm:$0xff]
    %v72 = vld [vmem:[%s1 + $0x1a8] sm:$0xff]
    %v73 = vld [vmem:[%s1 + $0x1b0] sm:$0xff]
    %v74 = vld [vmem:[%s1 + $0x1b8] sm:$0xff]
    %v75 = vld [vmem:[%s1 + $0x1c0] sm:$0xff]
    %v76 = vld [vmem:[%s1 + $0x1c8] sm:$0xff]
    %v77 = vld [vmem:[%s1 + $0x1d0] sm:$0xff]
    %v78 = vld [vmem:[%s1 + $0x1d8] sm:$0xff]
    %v79 = vld [vmem:[%s1 + $0x1e0] sm:$0xff]
    %v80 = vld [vmem:[%s1 + $0x1e8] sm:$0xff]
    %v81 = vld [vmem:[%s1 + $0x1f0] sm:$0xff]
    %v82 = vld [vmem:[%s1 + $0x1f8] sm:$0xff]
    %v83 = vld [vmem:[%s2] sm:$0x1]
    %v85 = vlaneseq
    %v86 = vshrl.u32 %v85, 7
    %v87 = vsub.s32 0, %v86
    %v88 = vrot.slane %v83, %v87
    %90 = vmatprep.subr.mxu0 0.0
    %v91 = vand.u32 %v19, 4294901760
    %92 = vmatpush1.msra.mxu0 %v91
    %93 = vmatprep.subr.mxu0 0.0
    %v94 = vand.u32 %v20, 4294901760
    %95 = vmatpush1.msra.mxu0 %v94
    %96 = vmatprep.subr.mxu0 0.0
    %v97 = vand.u32 %v21, 4294901760
    %98 = vmatpush1.msra.mxu0 %v97
    %99 = vmatprep.subr.mxu0 0.0
    %v100 = vand.u32 %v22, 4294901760
    %101 = vmatpush1.msra.mxu0 %v100
    %102 = vmatprep.subr.mxu0 0.0
    %v103 = vand.u32 %v23, 4294901760
    %104 = vmatpush1.msra.mxu0 %v103
    %105 = vmatprep.subr.mxu0 0.0
    %v106 = vand.u32 %v24, 4294901760
    %107 = vmatpush1.msra.mxu0 %v106
    %108 = vmatprep.subr.mxu0 0.0
    %v109 = vand.u32 %v25, 4294901760
    %110 = vmatpush1.msra.mxu0 %v109
    %111 = vmatprep.subr.mxu0 0.0
    %v112 = vand.u32 %v26, 4294901760
    %113 = vmatpush1.msra.mxu0 %v112
    %114 = vmatprep.subr.mxu0 0.0
    %v115 = vand.u32 %v27, 4294901760
    %116 = vmatpush1.msra.mxu0 %v115
    %117 = vmatprep.subr.mxu0 0.0
    %v118 = vand.u32 %v28, 4294901760
    %119 = vmatpush1.msra.mxu0 %v118
    %120 = vmatprep.subr.mxu0 0.0
    %v121 = vand.u32 %v29, 4294901760
    %122 = vmatpush1.msra.mxu0 %v121
    %123 = vmatprep.subr.mxu0 0.0
    %v124 = vand.u32 %v30, 4294901760
    %125 = vmatpush1.msra.mxu0 %v124
    %126 = vmatprep.subr.mxu0 0.0
    %v127 = vand.u32 %v31, 4294901760
    %128 = vmatpush1.msra.mxu0 %v127
    %129 = vmatprep.subr.mxu0 0.0
    %v130 = vand.u32 %v32, 4294901760
    %131 = vmatpush1.msra.mxu0 %v130
    %132 = vmatprep.subr.mxu0 0.0
    %v133 = vand.u32 %v33, 4294901760
    %134 = vmatpush1.msra.mxu0 %v133
    %135 = vmatprep.subr.mxu0 0.0
    %v136 = vand.u32 %v34, 4294901760
    %137 = vmatpush1.msra.mxu0 %v136
    %138 = vmatprep.subr.mxu0 0.0
    %v139 = vand.u32 %v35, 4294901760
    %140 = vmatpush1.msra.mxu0 %v139
    %141 = vmatprep.subr.mxu0 0.0
    %v142 = vand.u32 %v36, 4294901760
    %143 = vmatpush1.msra.mxu0 %v142
    %144 = vmatprep.subr.mxu0 0.0
    %v145 = vand.u32 %v37, 4294901760
    %146 = vmatpush1.msra.mxu0 %v145
    %147 = vmatprep.subr.mxu0 0.0
    %v148 = vand.u32 %v38, 4294901760
    %149 = vmatpush1.msra.mxu0 %v148
    %150 = vmatprep.subr.mxu0 0.0
    %v151 = vand.u32 %v39, 4294901760
    %152 = vmatpush1.msra.mxu0 %v151
    %153 = vmatprep.subr.mxu0 0.0
    %v154 = vand.u32 %v40, 4294901760
    %155 = vmatpush1.msra.mxu0 %v154
    %156 = vmatprep.subr.mxu0 0.0
    %v157 = vand.u32 %v41, 4294901760
    %158 = vmatpush1.msra.mxu0 %v157
    %159 = vmatprep.subr.mxu0 0.0
    %v160 = vand.u32 %v42, 4294901760
    %161 = vmatpush1.msra.mxu0 %v160
    %162 = vmatprep.subr.mxu0 0.0
    %v163 = vand.u32 %v43, 4294901760
    %164 = vmatpush1.msra.mxu0 %v163
    %165 = vmatprep.subr.mxu0 0.0
    %v166 = vand.u32 %v44, 4294901760
    %167 = vmatpush1.msra.mxu0 %v166
    %168 = vmatprep.subr.mxu0 0.0
    %v169 = vand.u32 %v45, 4294901760
    %170 = vmatpush1.msra.mxu0 %v169
    %171 = vmatprep.subr.mxu0 0.0
    %v172 = vand.u32 %v46, 4294901760
    %173 = vmatpush1.msra.mxu0 %v172
    %174 = vmatprep.subr.mxu0 0.0
    %v175 = vand.u32 %v47, 4294901760
    %176 = vmatpush1.msra.mxu0 %v175
    %177 = vmatprep.subr.mxu0 0.0
    %v178 = vand.u32 %v48, 4294901760
    %179 = vmatpush1.msra.mxu0 %v178
    %180 = vmatprep.subr.mxu0 0.0
    %v181 = vand.u32 %v49, 4294901760
    %182 = vmatpush1.msra.mxu0 %v181
    %183 = vmatprep.subr.mxu0 0.0
    %v184 = vand.u32 %v50, 4294901760
    %185 = vmatpush1.msra.mxu0 %v184
    %v186 = vand.u32 %v16, 4294901760
    %v187 = vsub.f32 %v16, %v186
    %v188 = vand.u32 %v187, 4294901760
    %v189 = vsub.f32 %v187, %v188
    %v190 = vand.u32 %v189, 4294901760
    %191 = vmatprep.mubr.f32.mxu0 %v190
    %v192 = vand.u32 %v15, 4294901760
    %v193 = vsub.f32 %v15, %v192
    %v194 = vand.u32 %v193, 4294901760
    %v195 = vsub.f32 %v193, %v194
    %v196 = vand.u32 %v195, 4294901760
    %197 = vmatmul.mubr.f32.gmra.mrb[0].mxu0 %v196
    %v198 = vpop.f32.mrb[0].mxu0
    %v199 = vadd.f32 %v88, %v198
    %v200 = vpop.f32.mrb[0].mxu0
    %201 = vdwg.mxu0
    %202 = vmatprep.subr.mxu0 0.0
    %v203 = vand.u32 %v19, 4294901760
    %v204 = vsub.f32 %v19, %v203
    %v205 = vand.u32 %v204, 4294901760
    %v206 = vsub.f32 %v204, %v205
    %v207 = vand.u32 %v206, 4294901760
    %208 = vmatpush1.msra.mxu0 %v207
    %209 = vmatprep.subr.mxu0 0.0
    %v210 = vand.u32 %v20, 4294901760
    %v211 = vsub.f32 %v20, %v210
    %v212 = vand.u32 %v211, 4294901760
    %v213 = vsub.f32 %v211, %v212
    %v214 = vand.u32 %v213, 4294901760
    %215 = vmatpush1.msra.mxu0 %v214
    %216 = vmatprep.subr.mxu0 0.0
    %v217 = vand.u32 %v21, 4294901760
    %v218 = vsub.f32 %v21, %v217
    %v219 = vand.u32 %v218, 4294901760
    %v220 = vsub.f32 %v218, %v219
    %v221 = vand.u32 %v220, 4294901760
    %222 = vmatpush1.msra.mxu0 %v221
    %223 = vmatprep.subr.mxu0 0.0
    %v224 = vand.u32 %v22, 4294901760
    %v225 = vsub.f32 %v22, %v224
    %v226 = vand.u32 %v225, 4294901760
    %v227 = vsub.f32 %v225, %v226
    %v228 = vand.u32 %v227, 4294901760
    %229 = vmatpush1.msra.mxu0 %v228
    %230 = vmatprep.subr.mxu0 0.0
    %v231 = vand.u32 %v23, 4294901760
    %v232 = vsub.f32 %v23, %v231
    %v233 = vand.u32 %v232, 4294901760
    %v234 = vsub.f32 %v232, %v233
    %v235 = vand.u32 %v234, 4294901760
    %236 = vmatpush1.msra.mxu0 %v235
    %237 = vmatprep.subr.mxu0 0.0
    %v238 = vand.u32 %v24, 4294901760
    %v239 = vsub.f32 %v24, %v238
    %v240 = vand.u32 %v239, 4294901760
    %v241 = vsub.f32 %v239, %v240
    %v242 = vand.u32 %v241, 4294901760
    %243 = vmatpush1.msra.mxu0 %v242
    %244 = vmatprep.subr.mxu0 0.0
    %v245 = vand.u32 %v25, 4294901760
    %v246 = vsub.f32 %v25, %v245
    %v247 = vand.u32 %v246, 4294901760
    %v248 = vsub.f32 %v246, %v247
    %v249 = vand.u32 %v248, 4294901760
    %250 = vmatpush1.msra.mxu0 %v249
    %251 = vmatprep.subr.mxu0 0.0
    %v252 = vand.u32 %v26, 4294901760
    %v253 = vsub.f32 %v26, %v252
    %v254 = vand.u32 %v253, 4294901760
    %v255 = vsub.f32 %v253, %v254
    %v256 = vand.u32 %v255, 4294901760
    %257 = vmatpush1.msra.mxu0 %v256
    %258 = vmatprep.subr.mxu0 0.0
    %v259 = vand.u32 %v27, 4294901760
    %v260 = vsub.f32 %v27, %v259
    %v261 = vand.u32 %v260, 4294901760
    %v262 = vsub.f32 %v260, %v261
    %v263 = vand.u32 %v262, 4294901760
    %264 = vmatpush1.msra.mxu0 %v263
    %265 = vmatprep.subr.mxu0 0.0
    %v266 = vand.u32 %v28, 4294901760
    %v267 = vsub.f32 %v28, %v266
    %v268 = vand.u32 %v267, 4294901760
    %v269 = vsub.f32 %v267, %v268
    %v270 = vand.u32 %v269, 4294901760
    %271 = vmatpush1.msra.mxu0 %v270
    %272 = vmatprep.subr.mxu0 0.0
    %v273 = vand.u32 %v29, 4294901760
    %v274 = vsub.f32 %v29, %v273
    %v275 = vand.u32 %v274, 4294901760
    %v276 = vsub.f32 %v274, %v275
    %v277 = vand.u32 %v276, 4294901760
    %278 = vmatpush1.msra.mxu0 %v277
    %279 = vmatprep.subr.mxu0 0.0
    %v280 = vand.u32 %v30, 4294901760
    %v281 = vsub.f32 %v30, %v280
    %v282 = vand.u32 %v281, 4294901760
    %v283 = vsub.f32 %v281, %v282
    %v284 = vand.u32 %v283, 4294901760
    %285 = vmatpush1.msra.mxu0 %v284
    %286 = vmatprep.subr.mxu0 0.0
    %v287 = vand.u32 %v31, 4294901760
    %v288 = vsub.f32 %v31, %v287
    %v289 = vand.u32 %v288, 4294901760
    %v290 = vsub.f32 %v288, %v289
    %v291 = vand.u32 %v290, 4294901760
    %292 = vmatpush1.msra.mxu0 %v291
    %293 = vmatprep.subr.mxu0 0.0
    %v294 = vand.u32 %v32, 4294901760
    %v295 = vsub.f32 %v32, %v294
    %v296 = vand.u32 %v295, 4294901760
    %v297 = vsub.f32 %v295, %v296
    %v298 = vand.u32 %v297, 4294901760
    %299 = vmatpush1.msra.mxu0 %v298
    %300 = vmatprep.subr.mxu0 0.0
    %v301 = vand.u32 %v33, 4294901760
    %v302 = vsub.f32 %v33, %v301
    %v303 = vand.u32 %v302, 4294901760
    %v304 = vsub.f32 %v302, %v303
    %v305 = vand.u32 %v304, 4294901760
    %306 = vmatpush1.msra.mxu0 %v305
    %307 = vmatprep.subr.mxu0 0.0
    %v308 = vand.u32 %v34, 4294901760
    %v309 = vsub.f32 %v34, %v308
    %v310 = vand.u32 %v309, 4294901760
    %v311 = vsub.f32 %v309, %v310
    %v312 = vand.u32 %v311, 4294901760
    %313 = vmatpush1.msra.mxu0 %v312
    %314 = vmatprep.subr.mxu0 0.0
    %v315 = vand.u32 %v35, 4294901760
    %v316 = vsub.f32 %v35, %v315
    %v317 = vand.u32 %v316, 4294901760
    %v318 = vsub.f32 %v316, %v317
    %v319 = vand.u32 %v318, 4294901760
    %320 = vmatpush1.msra.mxu0 %v319
    %321 = vmatprep.subr.mxu0 0.0
    %v322 = vand.u32 %v36, 4294901760
    %v323 = vsub.f32 %v36, %v322
    %v324 = vand.u32 %v323, 4294901760
    %v325 = vsub.f32 %v323, %v324
    %v326 = vand.u32 %v325, 4294901760
    %327 = vmatpush1.msra.mxu0 %v326
    %328 = vmatprep.subr.mxu0 0.0
    %v329 = vand.u32 %v37, 4294901760
    %v330 = vsub.f32 %v37, %v329
    %v331 = vand.u32 %v330, 4294901760
    %v332 = vsub.f32 %v330, %v331
    %v333 = vand.u32 %v332, 4294901760
    %334 = vmatpush1.msra.mxu0 %v333
    %335 = vmatprep.subr.mxu0 0.0
    %v336 = vand.u32 %v38, 4294901760
    %v337 = vsub.f32 %v38, %v336
    %v338 = vand.u32 %v337, 4294901760
    %v339 = vsub.f32 %v337, %v338
    %v340 = vand.u32 %v339, 4294901760
    %341 = vmatpush1.msra.mxu0 %v340
    %342 = vmatprep.subr.mxu0 0.0
    %v343 = vand.u32 %v39, 4294901760
    %v344 = vsub.f32 %v39, %v343
    %v345 = vand.u32 %v344, 4294901760
    %v346 = vsub.f32 %v344, %v345
    %v347 = vand.u32 %v346, 4294901760
    %348 = vmatpush1.msra.mxu0 %v347
    %349 = vmatprep.subr.mxu0 0.0
    %v350 = vand.u32 %v40, 4294901760
    %v351 = vsub.f32 %v40, %v350
    %v352 = vand.u32 %v351, 4294901760
    %v353 = vsub.f32 %v351, %v352
    %v354 = vand.u32 %v353, 4294901760
    %355 = vmatpush1.msra.mxu0 %v354
    %356 = vmatprep.subr.mxu0 0.0
    %v357 = vand.u32 %v41, 4294901760
    %v358 = vsub.f32 %v41, %v357
    %v359 = vand.u32 %v358, 4294901760
    %v360 = vsub.f32 %v358, %v359
    %v361 = vand.u32 %v360, 4294901760
    %362 = vmatpush1.msra.mxu0 %v361
    %363 = vmatprep.subr.mxu0 0.0
    %v364 = vand.u32 %v42, 4294901760
    %v365 = vsub.f32 %v42, %v364
    %v366 = vand.u32 %v365, 4294901760
    %v367 = vsub.f32 %v365, %v366
    %v368 = vand.u32 %v367, 4294901760
    %369 = vmatpush1.msra.mxu0 %v368
    %370 = vmatprep.subr.mxu0 0.0
    %v371 = vand.u32 %v43, 4294901760
    %v372 = vsub.f32 %v43, %v371
    %v373 = vand.u32 %v372, 4294901760
    %v374 = vsub.f32 %v372, %v373
    %v375 = vand.u32 %v374, 4294901760
    %376 = vmatpush1.msra.mxu0 %v375
    %377 = vmatprep.subr.mxu0 0.0
    %v378 = vand.u32 %v44, 4294901760
    %v379 = vsub.f32 %v44, %v378
    %v380 = vand.u32 %v379, 4294901760
    %v381 = vsub.f32 %v379, %v380
    %v382 = vand.u32 %v381, 4294901760
    %383 = vmatpush1.msra.mxu0 %v382
    %384 = vmatprep.subr.mxu0 0.0
    %v385 = vand.u32 %v45, 4294901760
    %v386 = vsub.f32 %v45, %v385
    %v387 = vand.u32 %v386, 4294901760
    %v388 = vsub.f32 %v386, %v387
    %v389 = vand.u32 %v388, 4294901760
    %390 = vmatpush1.msra.mxu0 %v389
    %391 = vmatprep.subr.mxu0 0.0
    %v392 = vand.u32 %v46, 4294901760
    %v393 = vsub.f32 %v46, %v392
    %v394 = vand.u32 %v393, 4294901760
    %v395 = vsub.f32 %v393, %v394
    %v396 = vand.u32 %v395, 4294901760
    %397 = vmatpush1.msra.mxu0 %v396
    %398 = vmatprep.subr.mxu0 0.0
    %v399 = vand.u32 %v47, 4294901760
    %v400 = vsub.f32 %v47, %v399
    %v401 = vand.u32 %v400, 4294901760
    %v402 = vsub.f32 %v400, %v401
    %v403 = vand.u32 %v402, 4294901760
    %404 = vmatpush1.msra.mxu0 %v403
    %405 = vmatprep.subr.mxu0 0.0
    %v406 = vand.u32 %v48, 4294901760
    %v407 = vsub.f32 %v48, %v406
    %v408 = vand.u32 %v407, 4294901760
    %v409 = vsub.f32 %v407, %v408
    %v410 = vand.u32 %v409, 4294901760
    %411 = vmatpush1.msra.mxu0 %v410
    %412 = vmatprep.subr.mxu0 0.0
    %v413 = vand.u32 %v49, 4294901760
    %v414 = vsub.f32 %v49, %v413
    %v415 = vand.u32 %v414, 4294901760
    %v416 = vsub.f32 %v414, %v415
    %v417 = vand.u32 %v416, 4294901760
    %418 = vmatpush1.msra.mxu0 %v417
    %419 = vmatprep.subr.mxu0 0.0
    %v420 = vand.u32 %v50, 4294901760
    %v421 = vsub.f32 %v50, %v420
    %v422 = vand.u32 %v421, 4294901760
    %v423 = vsub.f32 %v421, %v422
    %v424 = vand.u32 %v423, 4294901760
    %425 = vmatpush1.msra.mxu0 %v424
    %v426 = vand.u32 %v16, 4294901760
    %427 = vmatprep.mubr.f32.mxu0 %v426
    %v428 = vand.u32 %v15, 4294901760
    %429 = vmatmul.mubr.f32.gmra.mrb[0].mxu0 %v428
    %v430 = vpop.f32.mrb[0].mxu0
    %v431 = vadd.f32 %v199, %v430
    %v432 = vpop.f32.mrb[0].mxu0
    %433 = vdwg.mxu0
    %434 = vmatprep.subr.mxu0 0.0
    %v435 = vand.u32 %v19, 4294901760
    %v436 = vsub.f32 %v19, %v435
    %437 = vmatpush1.msra.mxu0 %v436
    %438 = vmatprep.subr.mxu0 0.0
    %v439 = vand.u32 %v20, 4294901760
    %v440 = vsub.f32 %v20, %v439
    %441 = vmatpush1.msra.mxu0 %v440
    %442 = vmatprep.subr.mxu0 0.0
    %v443 = vand.u32 %v21, 4294901760
    %v444 = vsub.f32 %v21, %v443
    %445 = vmatpush1.msra.mxu0 %v444
    %446 = vmatprep.subr.mxu0 0.0
    %v447 = vand.u32 %v22, 4294901760
    %v448 = vsub.f32 %v22, %v447
    %449 = vmatpush1.msra.mxu0 %v448
    %450 = vmatprep.subr.mxu0 0.0
    %v451 = vand.u32 %v23, 4294901760
    %v452 = vsub.f32 %v23, %v451
    %453 = vmatpush1.msra.mxu0 %v452
    %454 = vmatprep.subr.mxu0 0.0
    %v455 = vand.u32 %v24, 4294901760
    %v456 = vsub.f32 %v24, %v455
    %457 = vmatpush1.msra.mxu0 %v456
    %458 = vmatprep.subr.mxu0 0.0
    %v459 = vand.u32 %v25, 4294901760
    %v460 = vsub.f32 %v25, %v459
    %461 = vmatpush1.msra.mxu0 %v460
    %462 = vmatprep.subr.mxu0 0.0
    %v463 = vand.u32 %v26, 4294901760
    %v464 = vsub.f32 %v26, %v463
    %465 = vmatpush1.msra.mxu0 %v464
    %466 = vmatprep.subr.mxu0 0.0
    %v467 = vand.u32 %v27, 4294901760
    %v468 = vsub.f32 %v27, %v467
    %469 = vmatpush1.msra.mxu0 %v468
    %470 = vmatprep.subr.mxu0 0.0
    %v471 = vand.u32 %v28, 4294901760
    %v472 = vsub.f32 %v28, %v471
    %473 = vmatpush1.msra.mxu0 %v472
    %474 = vmatprep.subr.mxu0 0.0
    %v475 = vand.u32 %v29, 4294901760
    %v476 = vsub.f32 %v29, %v475
    %477 = vmatpush1.msra.mxu0 %v476
    %478 = vmatprep.subr.mxu0 0.0
    %v479 = vand.u32 %v30, 4294901760
    %v480 = vsub.f32 %v30, %v479
    %481 = vmatpush1.msra.mxu0 %v480
    %482 = vmatprep.subr.mxu0 0.0
    %v483 = vand.u32 %v31, 4294901760
    %v484 = vsub.f32 %v31, %v483
    %485 = vmatpush1.msra.mxu0 %v484
    %486 = vmatprep.subr.mxu0 0.0
    %v487 = vand.u32 %v32, 4294901760
    %v488 = vsub.f32 %v32, %v487
    %489 = vmatpush1.msra.mxu0 %v488
    %490 = vmatprep.subr.mxu0 0.0
    %v491 = vand.u32 %v33, 4294901760
    %v492 = vsub.f32 %v33, %v491
    %493 = vmatpush1.msra.mxu0 %v492
    %494 = vmatprep.subr.mxu0 0.0
    %v495 = vand.u32 %v34, 4294901760
    %v496 = vsub.f32 %v34, %v495
    %497 = vmatpush1.msra.mxu0 %v496
    %498 = vmatprep.subr.mxu0 0.0
    %v499 = vand.u32 %v35, 4294901760
    %v500 = vsub.f32 %v35, %v499
    %501 = vmatpush1.msra.mxu0 %v500
    %502 = vmatprep.subr.mxu0 0.0
    %v503 = vand.u32 %v36, 4294901760
    %v504 = vsub.f32 %v36, %v503
    %505 = vmatpush1.msra.mxu0 %v504
    %506 = vmatprep.subr.mxu0 0.0
    %v507 = vand.u32 %v37, 4294901760
    %v508 = vsub.f32 %v37, %v507
    %509 = vmatpush1.msra.mxu0 %v508
    %510 = vmatprep.subr.mxu0 0.0
    %v511 = vand.u32 %v38, 4294901760
    %v512 = vsub.f32 %v38, %v511
    %513 = vmatpush1.msra.mxu0 %v512
    %514 = vmatprep.subr.mxu0 0.0
    %v515 = vand.u32 %v39, 4294901760
    %v516 = vsub.f32 %v39, %v515
    %517 = vmatpush1.msra.mxu0 %v516
    %518 = vmatprep.subr.mxu0 0.0
    %v519 = vand.u32 %v40, 4294901760
    %v520 = vsub.f32 %v40, %v519
    %521 = vmatpush1.msra.mxu0 %v520
    %522 = vmatprep.subr.mxu0 0.0
    %v523 = vand.u32 %v41, 4294901760
    %v524 = vsub.f32 %v41, %v523
    %525 = vmatpush1.msra.mxu0 %v524
    %526 = vmatprep.subr.mxu0 0.0
    %v527 = vand.u32 %v42, 4294901760
    %v528 = vsub.f32 %v42, %v527
    %529 = vmatpush1.msra.mxu0 %v528
    %530 = vmatprep.subr.mxu0 0.0
    %v531 = vand.u32 %v43, 4294901760
    %v532 = vsub.f32 %v43, %v531
    %533 = vmatpush1.msra.mxu0 %v532
    %534 = vmatprep.subr.mxu0 0.0
    %v535 = vand.u32 %v44, 4294901760
    %v536 = vsub.f32 %v44, %v535
    %537 = vmatpush1.msra.mxu0 %v536
    %538 = vmatprep.subr.mxu0 0.0
    %v539 = vand.u32 %v45, 4294901760
    %v540 = vsub.f32 %v45, %v539
    %541 = vmatpush1.msra.mxu0 %v540
    %542 = vmatprep.subr.mxu0 0.0
    %v543 = vand.u32 %v46, 4294901760
    %v544 = vsub.f32 %v46, %v543
    %545 = vmatpush1.msra.mxu0 %v544
    %546 = vmatprep.subr.mxu0 0.0
    %v547 = vand.u32 %v47, 4294901760
    %v548 = vsub.f32 %v47, %v547
    %549 = vmatpush1.msra.mxu0 %v548
    %550 = vmatprep.subr.mxu0 0.0
    %v551 = vand.u32 %v48, 4294901760
    %v552 = vsub.f32 %v48, %v551
    %553 = vmatpush1.msra.mxu0 %v552
    %554 = vmatprep.subr.mxu0 0.0
    %v555 = vand.u32 %v49, 4294901760
    %v556 = vsub.f32 %v49, %v555
    %557 = vmatpush1.msra.mxu0 %v556
    %558 = vmatprep.subr.mxu0 0.0
    %v559 = vand.u32 %v50, 4294901760
    %v560 = vsub.f32 %v50, %v559
    %561 = vmatpush1.msra.mxu0 %v560
    %v562 = vand.u32 %v16, 4294901760
    %v563 = vsub.f32 %v16, %v562
    %564 = vmatprep.mubr.f32.mxu0 %v563
    %v565 = vand.u32 %v15, 4294901760
    %v566 = vsub.f32 %v15, %v565
    %567 = vmatmul.mubr.f32.gmra.mrb[0].mxu0 %v566
    %v568 = vpop.f32.mrb[0].mxu0
    %v569 = vadd.f32 %v431, %v568
    %v570 = vpop.f32.mrb[0].mxu0
    %571 = vdwg.mxu0
    %572 = vmatprep.subr.mxu0 0.0
    %v573 = vand.u32 %v19, 4294901760
    %574 = vmatpush1.msra.mxu0 %v573
    %575 = vmatprep.subr.mxu0 0.0
    %v576 = vand.u32 %v20, 4294901760
    %577 = vmatpush1.msra.mxu0 %v576
    %578 = vmatprep.subr.mxu0 0.0
    %v579 = vand.u32 %v21, 4294901760
    %580 = vmatpush1.msra.mxu0 %v579
    %581 = vmatprep.subr.mxu0 0.0
    %v582 = vand.u32 %v22, 4294901760
    %583 = vmatpush1.msra.mxu0 %v582
    %584 = vmatprep.subr.mxu0 0.0
    %v585 = vand.u32 %v23, 4294901760
    %586 = vmatpush1.msra.mxu0 %v585
    %587 = vmatprep.subr.mxu0 0.0
    %v588 = vand.u32 %v24, 4294901760
    %589 = vmatpush1.msra.mxu0 %v588
    %590 = vmatprep.subr.mxu0 0.0
    %v591 = vand.u32 %v25, 4294901760
    %592 = vmatpush1.msra.mxu0 %v591
    %593 = vmatprep.subr.mxu0 0.0
    %v594 = vand.u32 %v26, 4294901760
    %595 = vmatpush1.msra.mxu0 %v594
    %596 = vmatprep.subr.mxu0 0.0
    %v597 = vand.u32 %v27, 4294901760
    %598 = vmatpush1.msra.mxu0 %v597
    %599 = vmatprep.subr.mxu0 0.0
    %v600 = vand.u32 %v28, 4294901760
    %601 = vmatpush1.msra.mxu0 %v600
    %602 = vmatprep.subr.mxu0 0.0
    %v603 = vand.u32 %v29, 4294901760
    %604 = vmatpush1.msra.mxu0 %v603
    %605 = vmatprep.subr.mxu0 0.0
    %v606 = vand.u32 %v30, 4294901760
    %607 = vmatpush1.msra.mxu0 %v606
    %608 = vmatprep.subr.mxu0 0.0
    %v609 = vand.u32 %v31, 4294901760
    %610 = vmatpush1.msra.mxu0 %v609
    %611 = vmatprep.subr.mxu0 0.0
    %v612 = vand.u32 %v32, 4294901760
    %613 = vmatpush1.msra.mxu0 %v612
    %614 = vmatprep.subr.mxu0 0.0
    %v615 = vand.u32 %v33, 4294901760
    %616 = vmatpush1.msra.mxu0 %v615
    %617 = vmatprep.subr.mxu0 0.0
    %v618 = vand.u32 %v34, 4294901760
    %619 = vmatpush1.msra.mxu0 %v618
    %620 = vmatprep.subr.mxu0 0.0
    %v621 = vand.u32 %v35, 4294901760
    %622 = vmatpush1.msra.mxu0 %v621
    %623 = vmatprep.subr.mxu0 0.0
    %v624 = vand.u32 %v36, 4294901760
    %625 = vmatpush1.msra.mxu0 %v624
    %626 = vmatprep.subr.mxu0 0.0
    %v627 = vand.u32 %v37, 4294901760
    %628 = vmatpush1.msra.mxu0 %v627
    %629 = vmatprep.subr.mxu0 0.0
    %v630 = vand.u32 %v38, 4294901760
    %631 = vmatpush1.msra.mxu0 %v630
    %632 = vmatprep.subr.mxu0 0.0
    %v633 = vand.u32 %v39, 4294901760
    %634 = vmatpush1.msra.mxu0 %v633
    %635 = vmatprep.subr.mxu0 0.0
    %v636 = vand.u32 %v40, 4294901760
    %637 = vmatpush1.msra.mxu0 %v636
    %638 = vmatprep.subr.mxu0 0.0
    %v639 = vand.u32 %v41, 4294901760
    %640 = vmatpush1.msra.mxu0 %v639
    %641 = vmatprep.subr.mxu0 0.0
    %v642 = vand.u32 %v42, 4294901760
    %643 = vmatpush1.msra.mxu0 %v642
    %644 = vmatprep.subr.mxu0 0.0
    %v645 = vand.u32 %v43, 4294901760
    %646 = vmatpush1.msra.mxu0 %v645
    %647 = vmatprep.subr.mxu0 0.0
    %v648 = vand.u32 %v44, 4294901760
    %649 = vmatpush1.msra.mxu0 %v648
    %650 = vmatprep.subr.mxu0 0.0
    %v651 = vand.u32 %v45, 4294901760
    %652 = vmatpush1.msra.mxu0 %v651
    %653 = vmatprep.subr.mxu0 0.0
    %v654 = vand.u32 %v46, 4294901760
    %655 = vmatpush1.msra.mxu0 %v654
    %656 = vmatprep.subr.mxu0 0.0
    %v657 = vand.u32 %v47, 4294901760
    %658 = vmatpush1.msra.mxu0 %v657
    %659 = vmatprep.subr.mxu0 0.0
    %v660 = vand.u32 %v48, 4294901760
    %661 = vmatpush1.msra.mxu0 %v660
    %662 = vmatprep.subr.mxu0 0.0
    %v663 = vand.u32 %v49, 4294901760
    %664 = vmatpush1.msra.mxu0 %v663
    %665 = vmatprep.subr.mxu0 0.0
    %v666 = vand.u32 %v50, 4294901760
    %667 = vmatpush1.msra.mxu0 %v666
    %v668 = vand.u32 %v16, 4294901760
    %v669 = vsub.f32 %v16, %v668
    %v670 = vand.u32 %v669, 4294901760
    %671 = vmatprep.mubr.f32.mxu0 %v670
    %v672 = vand.u32 %v15, 4294901760
    %v673 = vsub.f32 %v15, %v672
    %v674 = vand.u32 %v673, 4294901760
    %675 = vmatmul.mubr.f32.gmra.mrb[0].mxu0 %v674
    %v676 = vpop.f32.mrb[0].mxu0
    %v677 = vadd.f32 %v569, %v676
    %v678 = vpop.f32.mrb[0].mxu0
    %679 = vdwg.mxu0
    %680 = vmatprep.subr.mxu0 0.0
    %v681 = vand.u32 %v19, 4294901760
    %v682 = vsub.f32 %v19, %v681
    %v683 = vand.u32 %v682, 4294901760
    %684 = vmatpush1.msra.mxu0 %v683
    %685 = vmatprep.subr.mxu0 0.0
    %v686 = vand.u32 %v20, 4294901760
    %v687 = vsub.f32 %v20, %v686
    %v688 = vand.u32 %v687, 4294901760
    %689 = vmatpush1.msra.mxu0 %v688
    %690 = vmatprep.subr.mxu0 0.0
    %v691 = vand.u32 %v21, 4294901760
    %v692 = vsub.f32 %v21, %v691
    %v693 = vand.u32 %v692, 4294901760
    %694 = vmatpush1.msra.mxu0 %v693
    %695 = vmatprep.subr.mxu0 0.0
    %v696 = vand.u32 %v22, 4294901760
    %v697 = vsub.f32 %v22, %v696
    %v698 = vand.u32 %v697, 4294901760
    %699 = vmatpush1.msra.mxu0 %v698
    %700 = vmatprep.subr.mxu0 0.0
    %v701 = vand.u32 %v23, 4294901760
    %v702 = vsub.f32 %v23, %v701
    %v703 = vand.u32 %v702, 4294901760
    %704 = vmatpush1.msra.mxu0 %v703
    %705 = vmatprep.subr.mxu0 0.0
    %v706 = vand.u32 %v24, 4294901760
    %v707 = vsub.f32 %v24, %v706
    %v708 = vand.u32 %v707, 4294901760
    %709 = vmatpush1.msra.mxu0 %v708
    %710 = vmatprep.subr.mxu0 0.0
    %v711 = vand.u32 %v25, 4294901760
    %v712 = vsub.f32 %v25, %v711
    %v713 = vand.u32 %v712, 4294901760
    %714 = vmatpush1.msra.mxu0 %v713
    %715 = vmatprep.subr.mxu0 0.0
    %v716 = vand.u32 %v26, 4294901760
    %v717 = vsub.f32 %v26, %v716
    %v718 = vand.u32 %v717, 4294901760
    %719 = vmatpush1.msra.mxu0 %v718
    %720 = vmatprep.subr.mxu0 0.0
    %v721 = vand.u32 %v27, 4294901760
    %v722 = vsub.f32 %v27, %v721
    %v723 = vand.u32 %v722, 4294901760
    %724 = vmatpush1.msra.mxu0 %v723
    %725 = vmatprep.subr.mxu0 0.0
    %v726 = vand.u32 %v28, 4294901760
    %v727 = vsub.f32 %v28, %v726
    %v728 = vand.u32 %v727, 4294901760
    %729 = vmatpush1.msra.mxu0 %v728
    %730 = vmatprep.subr.mxu0 0.0
    %v731 = vand.u32 %v29, 4294901760
    %v732 = vsub.f32 %v29, %v731
    %v733 = vand.u32 %v732, 4294901760
    %734 = vmatpush1.msra.mxu0 %v733
    %735 = vmatprep.subr.mxu0 0.0
    %v736 = vand.u32 %v30, 4294901760
    %v737 = vsub.f32 %v30, %v736
    %v738 = vand.u32 %v737, 4294901760
    %739 = vmatpush1.msra.mxu0 %v738
    %740 = vmatprep.subr.mxu0 0.0
    %v741 = vand.u32 %v31, 4294901760
    %v742 = vsub.f32 %v31, %v741
    %v743 = vand.u32 %v742, 4294901760
    %744 = vmatpush1.msra.mxu0 %v743
    %745 = vmatprep.subr.mxu0 0.0
    %v746 = vand.u32 %v32, 4294901760
    %v747 = vsub.f32 %v32, %v746
    %v748 = vand.u32 %v747, 4294901760
    %749 = vmatpush1.msra.mxu0 %v748
    %750 = vmatprep.subr.mxu0 0.0
    %v751 = vand.u32 %v33, 4294901760
    %v752 = vsub.f32 %v33, %v751
    %v753 = vand.u32 %v752, 4294901760
    %754 = vmatpush1.msra.mxu0 %v753
    %755 = vmatprep.subr.mxu0 0.0
    %v756 = vand.u32 %v34, 4294901760
    %v757 = vsub.f32 %v34, %v756
    %v758 = vand.u32 %v757, 4294901760
    %759 = vmatpush1.msra.mxu0 %v758
    %760 = vmatprep.subr.mxu0 0.0
    %v761 = vand.u32 %v35, 4294901760
    %v762 = vsub.f32 %v35, %v761
    %v763 = vand.u32 %v762, 4294901760
    %764 = vmatpush1.msra.mxu0 %v763
    %765 = vmatprep.subr.mxu0 0.0
    %v766 = vand.u32 %v36, 4294901760
    %v767 = vsub.f32 %v36, %v766
    %v768 = vand.u32 %v767, 4294901760
    %769 = vmatpush1.msra.mxu0 %v768
    %770 = vmatprep.subr.mxu0 0.0
    %v771 = vand.u32 %v37, 4294901760
    %v772 = vsub.f32 %v37, %v771
    %v773 = vand.u32 %v772, 4294901760
    %774 = vmatpush1.msra.mxu0 %v773
    %775 = vmatprep.subr.mxu0 0.0
    %v776 = vand.u32 %v38, 4294901760
    %v777 = vsub.f32 %v38, %v776
    %v778 = vand.u32 %v777, 4294901760
    %779 = vmatpush1.msra.mxu0 %v778
    %780 = vmatprep.subr.mxu0 0.0
    %v781 = vand.u32 %v39, 4294901760
    %v782 = vsub.f32 %v39, %v781
    %v783 = vand.u32 %v782, 4294901760
    %784 = vmatpush1.msra.mxu0 %v783
    %785 = vmatprep.subr.mxu0 0.0
    %v786 = vand.u32 %v40, 4294901760
    %v787 = vsub.f32 %v40, %v786
    %v788 = vand.u32 %v787, 4294901760
    %789 = vmatpush1.msra.mxu0 %v788
    %790 = vmatprep.subr.mxu0 0.0
    %v791 = vand.u32 %v41, 4294901760
    %v792 = vsub.f32 %v41, %v791
    %v793 = vand.u32 %v792, 4294901760
    %794 = vmatpush1.msra.mxu0 %v793
    %795 = vmatprep.subr.mxu0 0.0
    %v796 = vand.u32 %v42, 4294901760
    %v797 = vsub.f32 %v42, %v796
    %v798 = vand.u32 %v797, 4294901760
    %799 = vmatpush1.msra.mxu0 %v798
    %800 = vmatprep.subr.mxu0 0.0
    %v801 = vand.u32 %v43, 4294901760
    %v802 = vsub.f32 %v43, %v801
    %v803 = vand.u32 %v802, 4294901760
    %804 = vmatpush1.msra.mxu0 %v803
    %805 = vmatprep.subr.mxu0 0.0
    %v806 = vand.u32 %v44, 4294901760
    %v807 = vsub.f32 %v44, %v806
    %v808 = vand.u32 %v807, 4294901760
    %809 = vmatpush1.msra.mxu0 %v808
    %810 = vmatprep.subr.mxu0 0.0
    %v811 = vand.u32 %v45, 4294901760
    %v812 = vsub.f32 %v45, %v811
    %v813 = vand.u32 %v812, 4294901760
    %814 = vmatpush1.msra.mxu0 %v813
    %815 = vmatprep.subr.mxu0 0.0
    %v816 = vand.u32 %v46, 4294901760
    %v817 = vsub.f32 %v46, %v816
    %v818 = vand.u32 %v817, 4294901760
    %819 = vmatpush1.msra.mxu0 %v818
    %820 = vmatprep.subr.mxu0 0.0
    %v821 = vand.u32 %v47, 4294901760
    %v822 = vsub.f32 %v47, %v821
    %v823 = vand.u32 %v822, 4294901760
    %824 = vmatpush1.msra.mxu0 %v823
    %825 = vmatprep.subr.mxu0 0.0
    %v826 = vand.u32 %v48, 4294901760
    %v827 = vsub.f32 %v48, %v826
    %v828 = vand.u32 %v827, 4294901760
    %829 = vmatpush1.msra.mxu0 %v828
    %830 = vmatprep.subr.mxu0 0.0
    %v831 = vand.u32 %v49, 4294901760
    %v832 = vsub.f32 %v49, %v831
    %v833 = vand.u32 %v832, 4294901760
    %834 = vmatpush1.msra.mxu0 %v833
    %835 = vmatprep.subr.mxu0 0.0
    %v836 = vand.u32 %v50, 4294901760
    %v837 = vsub.f32 %v50, %v836
    %v838 = vand.u32 %v837, 4294901760
    %839 = vmatpush1.msra.mxu0 %v838
    %v840 = vand.u32 %v16, 4294901760
    %841 = vmatprep.mubr.f32.mxu0 %v840
    %v842 = vand.u32 %v15, 4294901760
    %843 = vmatmul.mubr.f32.gmra.mrb[0].mxu0 %v842
    %v844 = vpop.f32.mrb[0].mxu0
    %v845 = vadd.f32 %v677, %v844
    %v846 = vpop.f32.mrb[0].mxu0
    %847 = vdwg.mxu0
    %848 = vmatprep.subr.mxu0 0.0
    %v849 = vand.u32 %v19, 4294901760
    %850 = vmatpush1.msra.mxu0 %v849
    %851 = vmatprep.subr.mxu0 0.0
    %v852 = vand.u32 %v20, 4294901760
    %853 = vmatpush1.msra.mxu0 %v852
    %854 = vmatprep.subr.mxu0 0.0
    %v855 = vand.u32 %v21, 4294901760
    %856 = vmatpush1.msra.mxu0 %v855
    %857 = vmatprep.subr.mxu0 0.0
    %v858 = vand.u32 %v22, 4294901760
    %859 = vmatpush1.msra.mxu0 %v858
    %860 = vmatprep.subr.mxu0 0.0
    %v861 = vand.u32 %v23, 4294901760
    %862 = vmatpush1.msra.mxu0 %v861
    %863 = vmatprep.subr.mxu0 0.0
    %v864 = vand.u32 %v24, 4294901760
    %865 = vmatpush1.msra.mxu0 %v864
    %866 = vmatprep.subr.mxu0 0.0
    %v867 = vand.u32 %v25, 4294901760
    %868 = vmatpush1.msra.mxu0 %v867
    %869 = vmatprep.subr.mxu0 0.0
    %v870 = vand.u32 %v26, 4294901760
    %871 = vmatpush1.msra.mxu0 %v870
    %872 = vmatprep.subr.mxu0 0.0
    %v873 = vand.u32 %v27, 4294901760
    %874 = vmatpush1.msra.mxu0 %v873
    %875 = vmatprep.subr.mxu0 0.0
    %v876 = vand.u32 %v28, 4294901760
    %877 = vmatpush1.msra.mxu0 %v876
    %878 = vmatprep.subr.mxu0 0.0
    %v879 = vand.u32 %v29, 4294901760
    %880 = vmatpush1.msra.mxu0 %v879
    %881 = vmatprep.subr.mxu0 0.0
    %v882 = vand.u32 %v30, 4294901760
    %883 = vmatpush1.msra.mxu0 %v882
    %884 = vmatprep.subr.mxu0 0.0
    %v885 = vand.u32 %v31, 4294901760
    %886 = vmatpush1.msra.mxu0 %v885
    %887 = vmatprep.subr.mxu0 0.0
    %v888 = vand.u32 %v32, 4294901760
    %889 = vmatpush1.msra.mxu0 %v888
    %890 = vmatprep.subr.mxu0 0.0
    %v891 = vand.u32 %v33, 4294901760
    %892 = vmatpush1.msra.mxu0 %v891
    %893 = vmatprep.subr.mxu0 0.0
    %v894 = vand.u32 %v34, 4294901760
    %895 = vmatpush1.msra.mxu0 %v894
    %896 = vmatprep.subr.mxu0 0.0
    %v897 = vand.u32 %v35, 4294901760
    %898 = vmatpush1.msra.mxu0 %v897
    %899 = vmatprep.subr.mxu0 0.0
    %v900 = vand.u32 %v36, 4294901760
    %901 = vmatpush1.msra.mxu0 %v900
    %902 = vmatprep.subr.mxu0 0.0
    %v903 = vand.u32 %v37, 4294901760
    %904 = vmatpush1.msra.mxu0 %v903
    %905 = vmatprep.subr.mxu0 0.0
    %v906 = vand.u32 %v38, 4294901760
    %907 = vmatpush1.msra.mxu0 %v906
    %908 = vmatprep.subr.mxu0 0.0
    %v909 = vand.u32 %v39, 4294901760
    %910 = vmatpush1.msra.mxu0 %v909
    %911 = vmatprep.subr.mxu0 0.0
    %v912 = vand.u32 %v40, 4294901760
    %913 = vmatpush1.msra.mxu0 %v912
    %914 = vmatprep.subr.mxu0 0.0
    %v915 = vand.u32 %v41, 4294901760
    %916 = vmatpush1.msra.mxu0 %v915
    %917 = vmatprep.subr.mxu0 0.0
    %v918 = vand.u32 %v42, 4294901760
    %919 = vmatpush1.msra.mxu0 %v918
    %920 = vmatprep.subr.mxu0 0.0
    %v921 = vand.u32 %v43, 4294901760
    %922 = vmatpush1.msra.mxu0 %v921
    %923 = vmatprep.subr.mxu0 0.0
    %v924 = vand.u32 %v44, 4294901760
    %925 = vmatpush1.msra.mxu0 %v924
    %926 = vmatprep.subr.mxu0 0.0
    %v927 = vand.u32 %v45, 4294901760
    %928 = vmatpush1.msra.mxu0 %v927
    %929 = vmatprep.subr.mxu0 0.0
    %v930 = vand.u32 %v46, 4294901760
    %931 = vmatpush1.msra.mxu0 %v930
    %932 = vmatprep.subr.mxu0 0.0
    %v933 = vand.u32 %v47, 4294901760
    %934 = vmatpush1.msra.mxu0 %v933
    %935 = vmatprep.subr.mxu0 0.0
    %v936 = vand.u32 %v48, 4294901760
    %937 = vmatpush1.msra.mxu0 %v936
    %938 = vmatprep.subr.mxu0 0.0
    %v939 = vand.u32 %v49, 4294901760
    %940 = vmatpush1.msra.mxu0 %v939
    %941 = vmatprep.subr.mxu0 0.0
    %v942 = vand.u32 %v50, 4294901760
    %943 = vmatpush1.msra.mxu0 %v942
    %v944 = vand.u32 %v16, 4294901760
    %945 = vmatprep.mubr.f32.mxu0 %v944
    %v946 = vand.u32 %v15, 4294901760
    %947 = vmatmul.mubr.f32.gmra.mrb[0].mxu0 %v946
    %v948 = vpop.f32.mrb[0].mxu0
    %v949 = vadd.f32 %v845, %v948
    %v950 = vpop.f32.mrb[0].mxu0
    %951 = vdwg.mxu0
    %952 = vmatprep.subr.mxu0 0.0
    %v953 = vand.u32 %v51, 4294901760
    %954 = vmatpush1.msra.mxu0 %v953
    %955 = vmatprep.subr.mxu0 0.0
    %v956 = vand.u32 %v52, 4294901760
    %957 = vmatpush1.msra.mxu0 %v956
    %958 = vmatprep.subr.mxu0 0.0
    %v959 = vand.u32 %v53, 4294901760
    %960 = vmatpush1.msra.mxu0 %v959
    %961 = vmatprep.subr.mxu0 0.0
    %v962 = vand.u32 %v54, 4294901760
    %963 = vmatpush1.msra.mxu0 %v962
    %964 = vmatprep.subr.mxu0 0.0
    %v965 = vand.u32 %v55, 4294901760
    %966 = vmatpush1.msra.mxu0 %v965
    %967 = vmatprep.subr.mxu0 0.0
    %v968 = vand.u32 %v56, 4294901760
    %969 = vmatpush1.msra.mxu0 %v968
    %970 = vmatprep.subr.mxu0 0.0
    %v971 = vand.u32 %v57, 4294901760
    %972 = vmatpush1.msra.mxu0 %v971
    %973 = vmatprep.subr.mxu0 0.0
    %v974 = vand.u32 %v58, 4294901760
    %975 = vmatpush1.msra.mxu0 %v974
    %976 = vmatprep.subr.mxu0 0.0
    %v977 = vand.u32 %v59, 4294901760
    %978 = vmatpush1.msra.mxu0 %v977
    %979 = vmatprep.subr.mxu0 0.0
    %v980 = vand.u32 %v60, 4294901760
    %981 = vmatpush1.msra.mxu0 %v980
    %982 = vmatprep.subr.mxu0 0.0
    %v983 = vand.u32 %v61, 4294901760
    %984 = vmatpush1.msra.mxu0 %v983
    %985 = vmatprep.subr.mxu0 0.0
    %v986 = vand.u32 %v62, 4294901760
    %987 = vmatpush1.msra.mxu0 %v986
    %988 = vmatprep.subr.mxu0 0.0
    %v989 = vand.u32 %v63, 4294901760
    %990 = vmatpush1.msra.mxu0 %v989
    %991 = vmatprep.subr.mxu0 0.0
    %v992 = vand.u32 %v64, 4294901760
    %993 = vmatpush1.msra.mxu0 %v992
    %994 = vmatprep.subr.mxu0 0.0
    %v995 = vand.u32 %v65, 4294901760
    %996 = vmatpush1.msra.mxu0 %v995
    %997 = vmatprep.subr.mxu0 0.0
    %v998 = vand.u32 %v66, 4294901760
    %999 = vmatpush1.msra.mxu0 %v998
    %1000 = vmatprep.subr.mxu0 0.0
    %v1001 = vand.u32 %v67, 4294901760
    %1002 = vmatpush1.msra.mxu0 %v1001
    %1003 = vmatprep.subr.mxu0 0.0
    %v1004 = vand.u32 %v68, 4294901760
    %1005 = vmatpush1.msra.mxu0 %v1004
    %1006 = vmatprep.subr.mxu0 0.0
    %v1007 = vand.u32 %v69, 4294901760
    %1008 = vmatpush1.msra.mxu0 %v1007
    %1009 = vmatprep.subr.mxu0 0.0
    %v1010 = vand.u32 %v70, 4294901760
    %1011 = vmatpush1.msra.mxu0 %v1010
    %1012 = vmatprep.subr.mxu0 0.0
    %v1013 = vand.u32 %v71, 4294901760
    %1014 = vmatpush1.msra.mxu0 %v1013
    %1015 = vmatprep.subr.mxu0 0.0
    %v1016 = vand.u32 %v72, 4294901760
    %1017 = vmatpush1.msra.mxu0 %v1016
    %1018 = vmatprep.subr.mxu0 0.0
    %v1019 = vand.u32 %v73, 4294901760
    %1020 = vmatpush1.msra.mxu0 %v1019
    %1021 = vmatprep.subr.mxu0 0.0
    %v1022 = vand.u32 %v74, 4294901760
    %1023 = vmatpush1.msra.mxu0 %v1022
    %1024 = vmatprep.subr.mxu0 0.0
    %v1025 = vand.u32 %v75, 4294901760
    %1026 = vmatpush1.msra.mxu0 %v1025
    %1027 = vmatprep.subr.mxu0 0.0
    %v1028 = vand.u32 %v76, 4294901760
    %1029 = vmatpush1.msra.mxu0 %v1028
    %1030 = vmatprep.subr.mxu0 0.0
    %v1031 = vand.u32 %v77, 4294901760
    %1032 = vmatpush1.msra.mxu0 %v1031
    %1033 = vmatprep.subr.mxu0 0.0
    %v1034 = vand.u32 %v78, 4294901760
    %1035 = vmatpush1.msra.mxu0 %v1034
    %1036 = vmatprep.subr.mxu0 0.0
    %v1037 = vand.u32 %v79, 4294901760
    %1038 = vmatpush1.msra.mxu0 %v1037
    %1039 = vmatprep.subr.mxu0 0.0
    %v1040 = vand.u32 %v80, 4294901760
    %1041 = vmatpush1.msra.mxu0 %v1040
    %1042 = vmatprep.subr.mxu0 0.0
    %v1043 = vand.u32 %v81, 4294901760
    %1044 = vmatpush1.msra.mxu0 %v1043
    %1045 = vmatprep.subr.mxu0 0.0
    %v1046 = vand.u32 %v82, 4294901760
    %1047 = vmatpush1.msra.mxu0 %v1046
    %v1048 = vand.u32 %v18, 4294901760
    %v1049 = vsub.f32 %v18, %v1048
    %v1050 = vand.u32 %v1049, 4294901760
    %v1051 = vsub.f32 %v1049, %v1050
    %v1052 = vand.u32 %v1051, 4294901760
    %1053 = vmatprep.mubr.f32.mxu0 %v1052
    %v1054 = vand.u32 %v17, 4294901760
    %v1055 = vsub.f32 %v17, %v1054
    %v1056 = vand.u32 %v1055, 4294901760
    %v1057 = vsub.f32 %v1055, %v1056
    %v1058 = vand.u32 %v1057, 4294901760
    %1059 = vmatmul.mubr.f32.gmra.mrb[0].mxu0 %v1058
    %v1060 = vpop.f32.mrb[0].mxu0
    %v1061 = vadd.f32 %v949, %v1060
    %v1062 = vpop.f32.mrb[0].mxu0
    %1063 = vdwg.mxu0
    %1064 = vmatprep.subr.mxu0 0.0
    %v1065 = vand.u32 %v51, 4294901760
    %v1066 = vsub.f32 %v51, %v1065
    %v1067 = vand.u32 %v1066, 4294901760
    %v1068 = vsub.f32 %v1066, %v1067
    %v1069 = vand.u32 %v1068, 4294901760
    %1070 = vmatpush1.msra.mxu0 %v1069
    %1071 = vmatprep.subr.mxu0 0.0
    %v1072 = vand.u32 %v52, 4294901760
    %v1073 = vsub.f32 %v52, %v1072
    %v1074 = vand.u32 %v1073, 4294901760
    %v1075 = vsub.f32 %v1073, %v1074
    %v1076 = vand.u32 %v1075, 4294901760
    %1077 = vmatpush1.msra.mxu0 %v1076
    %1078 = vmatprep.subr.mxu0 0.0
    %v1079 = vand.u32 %v53, 4294901760
    %v1080 = vsub.f32 %v53, %v1079
    %v1081 = vand.u32 %v1080, 4294901760
    %v1082 = vsub.f32 %v1080, %v1081
    %v1083 = vand.u32 %v1082, 4294901760
    %1084 = vmatpush1.msra.mxu0 %v1083
    %1085 = vmatprep.subr.mxu0 0.0
    %v1086 = vand.u32 %v54, 4294901760
    %v1087 = vsub.f32 %v54, %v1086
    %v1088 = vand.u32 %v1087, 4294901760
    %v1089 = vsub.f32 %v1087, %v1088
    %v1090 = vand.u32 %v1089, 4294901760
    %1091 = vmatpush1.msra.mxu0 %v1090
    %1092 = vmatprep.subr.mxu0 0.0
    %v1093 = vand.u32 %v55, 4294901760
    %v1094 = vsub.f32 %v55, %v1093
    %v1095 = vand.u32 %v1094, 4294901760
    %v1096 = vsub.f32 %v1094, %v1095
    %v1097 = vand.u32 %v1096, 4294901760
    %1098 = vmatpush1.msra.mxu0 %v1097
    %1099 = vmatprep.subr.mxu0 0.0
    %v1100 = vand.u32 %v56, 4294901760
    %v1101 = vsub.f32 %v56, %v1100
    %v1102 = vand.u32 %v1101, 4294901760
    %v1103 = vsub.f32 %v1101, %v1102
    %v1104 = vand.u32 %v1103, 4294901760
    %1105 = vmatpush1.msra.mxu0 %v1104
    %1106 = vmatprep.subr.mxu0 0.0
    %v1107 = vand.u32 %v57, 4294901760
    %v1108 = vsub.f32 %v57, %v1107
    %v1109 = vand.u32 %v1108, 4294901760
    %v1110 = vsub.f32 %v1108, %v1109
    %v1111 = vand.u32 %v1110, 4294901760
    %1112 = vmatpush1.msra.mxu0 %v1111
    %1113 = vmatprep.subr.mxu0 0.0
    %v1114 = vand.u32 %v58, 4294901760
    %v1115 = vsub.f32 %v58, %v1114
    %v1116 = vand.u32 %v1115, 4294901760
    %v1117 = vsub.f32 %v1115, %v1116
    %v1118 = vand.u32 %v1117, 4294901760
    %1119 = vmatpush1.msra.mxu0 %v1118
    %1120 = vmatprep.subr.mxu0 0.0
    %v1121 = vand.u32 %v59, 4294901760
    %v1122 = vsub.f32 %v59, %v1121
    %v1123 = vand.u32 %v1122, 4294901760
    %v1124 = vsub.f32 %v1122, %v1123
    %v1125 = vand.u32 %v1124, 4294901760
    %1126 = vmatpush1.msra.mxu0 %v1125
    %1127 = vmatprep.subr.mxu0 0.0
    %v1128 = vand.u32 %v60, 4294901760
    %v1129 = vsub.f32 %v60, %v1128
    %v1130 = vand.u32 %v1129, 4294901760
    %v1131 = vsub.f32 %v1129, %v1130
    %v1132 = vand.u32 %v1131, 4294901760
    %1133 = vmatpush1.msra.mxu0 %v1132
    %1134 = vmatprep.subr.mxu0 0.0
    %v1135 = vand.u32 %v61, 4294901760
    %v1136 = vsub.f32 %v61, %v1135
    %v1137 = vand.u32 %v1136, 4294901760
    %v1138 = vsub.f32 %v1136, %v1137
    %v1139 = vand.u32 %v1138, 4294901760
    %1140 = vmatpush1.msra.mxu0 %v1139
    %1141 = vmatprep.subr.mxu0 0.0
    %v1142 = vand.u32 %v62, 4294901760
    %v1143 = vsub.f32 %v62, %v1142
    %v1144 = vand.u32 %v1143, 4294901760
    %v1145 = vsub.f32 %v1143, %v1144
    %v1146 = vand.u32 %v1145, 4294901760
    %1147 = vmatpush1.msra.mxu0 %v1146
    %1148 = vmatprep.subr.mxu0 0.0
    %v1149 = vand.u32 %v63, 4294901760
    %v1150 = vsub.f32 %v63, %v1149
    %v1151 = vand.u32 %v1150, 4294901760
    %v1152 = vsub.f32 %v1150, %v1151
    %v1153 = vand.u32 %v1152, 4294901760
    %1154 = vmatpush1.msra.mxu0 %v1153
    %1155 = vmatprep.subr.mxu0 0.0
    %v1156 = vand.u32 %v64, 4294901760
    %v1157 = vsub.f32 %v64, %v1156
    %v1158 = vand.u32 %v1157, 4294901760
    %v1159 = vsub.f32 %v1157, %v1158
    %v1160 = vand.u32 %v1159, 4294901760
    %1161 = vmatpush1.msra.mxu0 %v1160
    %1162 = vmatprep.subr.mxu0 0.0
    %v1163 = vand.u32 %v65, 4294901760
    %v1164 = vsub.f32 %v65, %v1163
    %v1165 = vand.u32 %v1164, 4294901760
    %v1166 = vsub.f32 %v1164, %v1165
    %v1167 = vand.u32 %v1166, 4294901760
    %1168 = vmatpush1.msra.mxu0 %v1167
    %1169 = vmatprep.subr.mxu0 0.0
    %v1170 = vand.u32 %v66, 4294901760
    %v1171 = vsub.f32 %v66, %v1170
    %v1172 = vand.u32 %v1171, 4294901760
    %v1173 = vsub.f32 %v1171, %v1172
    %v1174 = vand.u32 %v1173, 4294901760
    %1175 = vmatpush1.msra.mxu0 %v1174
    %1176 = vmatprep.subr.mxu0 0.0
    %v1177 = vand.u32 %v67, 4294901760
    %v1178 = vsub.f32 %v67, %v1177
    %v1179 = vand.u32 %v1178, 4294901760
    %v1180 = vsub.f32 %v1178, %v1179
    %v1181 = vand.u32 %v1180, 4294901760
    %1182 = vmatpush1.msra.mxu0 %v1181
    %1183 = vmatprep.subr.mxu0 0.0
    %v1184 = vand.u32 %v68, 4294901760
    %v1185 = vsub.f32 %v68, %v1184
    %v1186 = vand.u32 %v1185, 4294901760
    %v1187 = vsub.f32 %v1185, %v1186
    %v1188 = vand.u32 %v1187, 4294901760
    %1189 = vmatpush1.msra.mxu0 %v1188
    %1190 = vmatprep.subr.mxu0 0.0
    %v1191 = vand.u32 %v69, 4294901760
    %v1192 = vsub.f32 %v69, %v1191
    %v1193 = vand.u32 %v1192, 4294901760
    %v1194 = vsub.f32 %v1192, %v1193
    %v1195 = vand.u32 %v1194, 4294901760
    %1196 = vmatpush1.msra.mxu0 %v1195
    %1197 = vmatprep.subr.mxu0 0.0
    %v1198 = vand.u32 %v70, 4294901760
    %v1199 = vsub.f32 %v70, %v1198
    %v1200 = vand.u32 %v1199, 4294901760
    %v1201 = vsub.f32 %v1199, %v1200
    %v1202 = vand.u32 %v1201, 4294901760
    %1203 = vmatpush1.msra.mxu0 %v1202
    %1204 = vmatprep.subr.mxu0 0.0
    %v1205 = vand.u32 %v71, 4294901760
    %v1206 = vsub.f32 %v71, %v1205
    %v1207 = vand.u32 %v1206, 4294901760
    %v1208 = vsub.f32 %v1206, %v1207
    %v1209 = vand.u32 %v1208, 4294901760
    %1210 = vmatpush1.msra.mxu0 %v1209
    %1211 = vmatprep.subr.mxu0 0.0
    %v1212 = vand.u32 %v72, 4294901760
    %v1213 = vsub.f32 %v72, %v1212
    %v1214 = vand.u32 %v1213, 4294901760
    %v1215 = vsub.f32 %v1213, %v1214
    %v1216 = vand.u32 %v1215, 4294901760
    %1217 = vmatpush1.msra.mxu0 %v1216
    %1218 = vmatprep.subr.mxu0 0.0
    %v1219 = vand.u32 %v73, 4294901760
    %v1220 = vsub.f32 %v73, %v1219
    %v1221 = vand.u32 %v1220, 4294901760
    %v1222 = vsub.f32 %v1220, %v1221
    %v1223 = vand.u32 %v1222, 4294901760
    %1224 = vmatpush1.msra.mxu0 %v1223
    %1225 = vmatprep.subr.mxu0 0.0
    %v1226 = vand.u32 %v74, 4294901760
    %v1227 = vsub.f32 %v74, %v1226
    %v1228 = vand.u32 %v1227, 4294901760
    %v1229 = vsub.f32 %v1227, %v1228
    %v1230 = vand.u32 %v1229, 4294901760
    %1231 = vmatpush1.msra.mxu0 %v1230
    %1232 = vmatprep.subr.mxu0 0.0
    %v1233 = vand.u32 %v75, 4294901760
    %v1234 = vsub.f32 %v75, %v1233
    %v1235 = vand.u32 %v1234, 4294901760
    %v1236 = vsub.f32 %v1234, %v1235
    %v1237 = vand.u32 %v1236, 4294901760
    %1238 = vmatpush1.msra.mxu0 %v1237
    %1239 = vmatprep.subr.mxu0 0.0
    %v1240 = vand.u32 %v76, 4294901760
    %v1241 = vsub.f32 %v76, %v1240
    %v1242 = vand.u32 %v1241, 4294901760
    %v1243 = vsub.f32 %v1241, %v1242
    %v1244 = vand.u32 %v1243, 4294901760
    %1245 = vmatpush1.msra.mxu0 %v1244
    %1246 = vmatprep.subr.mxu0 0.0
    %v1247 = vand.u32 %v77, 4294901760
    %v1248 = vsub.f32 %v77, %v1247
    %v1249 = vand.u32 %v1248, 4294901760
    %v1250 = vsub.f32 %v1248, %v1249
    %v1251 = vand.u32 %v1250, 4294901760
    %1252 = vmatpush1.msra.mxu0 %v1251
    %1253 = vmatprep.subr.mxu0 0.0
    %v1254 = vand.u32 %v78, 4294901760
    %v1255 = vsub.f32 %v78, %v1254
    %v1256 = vand.u32 %v1255, 4294901760
    %v1257 = vsub.f32 %v1255, %v1256
    %v1258 = vand.u32 %v1257, 4294901760
    %1259 = vmatpush1.msra.mxu0 %v1258
    %1260 = vmatprep.subr.mxu0 0.0
    %v1261 = vand.u32 %v79, 4294901760
    %v1262 = vsub.f32 %v79, %v1261
    %v1263 = vand.u32 %v1262, 4294901760
    %v1264 = vsub.f32 %v1262, %v1263
    %v1265 = vand.u32 %v1264, 4294901760
    %1266 = vmatpush1.msra.mxu0 %v1265
    %1267 = vmatprep.subr.mxu0 0.0
    %v1268 = vand.u32 %v80, 4294901760
    %v1269 = vsub.f32 %v80, %v1268
    %v1270 = vand.u32 %v1269, 4294901760
    %v1271 = vsub.f32 %v1269, %v1270
    %v1272 = vand.u32 %v1271, 4294901760
    %1273 = vmatpush1.msra.mxu0 %v1272
    %1274 = vmatprep.subr.mxu0 0.0
    %v1275 = vand.u32 %v81, 4294901760
    %v1276 = vsub.f32 %v81, %v1275
    %v1277 = vand.u32 %v1276, 4294901760
    %v1278 = vsub.f32 %v1276, %v1277
    %v1279 = vand.u32 %v1278, 4294901760
    %1280 = vmatpush1.msra.mxu0 %v1279
    %1281 = vmatprep.subr.mxu0 0.0
    %v1282 = vand.u32 %v82, 4294901760
    %v1283 = vsub.f32 %v82, %v1282
    %v1284 = vand.u32 %v1283, 4294901760
    %v1285 = vsub.f32 %v1283, %v1284
    %v1286 = vand.u32 %v1285, 4294901760
    %1287 = vmatpush1.msra.mxu0 %v1286
    %v1288 = vand.u32 %v18, 4294901760
    %1289 = vmatprep.mubr.f32.mxu0 %v1288
    %v1290 = vand.u32 %v17, 4294901760
    %1291 = vmatmul.mubr.f32.gmra.mrb[0].mxu0 %v1290
    %v1292 = vpop.f32.mrb[0].mxu0
    %v1293 = vadd.f32 %v1061, %v1292
    %v1294 = vpop.f32.mrb[0].mxu0
    %1295 = vdwg.mxu0
    %1296 = vmatprep.subr.mxu0 0.0
    %v1297 = vand.u32 %v51, 4294901760
    %v1298 = vsub.f32 %v51, %v1297
    %1299 = vmatpush1.msra.mxu0 %v1298
    %1300 = vmatprep.subr.mxu0 0.0
    %v1301 = vand.u32 %v52, 4294901760
    %v1302 = vsub.f32 %v52, %v1301
    %1303 = vmatpush1.msra.mxu0 %v1302
    %1304 = vmatprep.subr.mxu0 0.0
    %v1305 = vand.u32 %v53, 4294901760
    %v1306 = vsub.f32 %v53, %v1305
    %1307 = vmatpush1.msra.mxu0 %v1306
    %1308 = vmatprep.subr.mxu0 0.0
    %v1309 = vand.u32 %v54, 4294901760
    %v1310 = vsub.f32 %v54, %v1309
    %1311 = vmatpush1.msra.mxu0 %v1310
    %1312 = vmatprep.subr.mxu0 0.0
    %v1313 = vand.u32 %v55, 4294901760
    %v1314 = vsub.f32 %v55, %v1313
    %1315 = vmatpush1.msra.mxu0 %v1314
    %1316 = vmatprep.subr.mxu0 0.0
    %v1317 = vand.u32 %v56, 4294901760
    %v1318 = vsub.f32 %v56, %v1317
    %1319 = vmatpush1.msra.mxu0 %v1318
    %1320 = vmatprep.subr.mxu0 0.0
    %v1321 = vand.u32 %v57, 4294901760
    %v1322 = vsub.f32 %v57, %v1321
    %1323 = vmatpush1.msra.mxu0 %v1322
    %1324 = vmatprep.subr.mxu0 0.0
    %v1325 = vand.u32 %v58, 4294901760
    %v1326 = vsub.f32 %v58, %v1325
    %1327 = vmatpush1.msra.mxu0 %v1326
    %1328 = vmatprep.subr.mxu0 0.0
    %v1329 = vand.u32 %v59, 4294901760
    %v1330 = vsub.f32 %v59, %v1329
    %1331 = vmatpush1.msra.mxu0 %v1330
    %1332 = vmatprep.subr.mxu0 0.0
    %v1333 = vand.u32 %v60, 4294901760
    %v1334 = vsub.f32 %v60, %v1333
    %1335 = vmatpush1.msra.mxu0 %v1334
    %1336 = vmatprep.subr.mxu0 0.0
    %v1337 = vand.u32 %v61, 4294901760
    %v1338 = vsub.f32 %v61, %v1337
    %1339 = vmatpush1.msra.mxu0 %v1338
    %1340 = vmatprep.subr.mxu0 0.0
    %v1341 = vand.u32 %v62, 4294901760
    %v1342 = vsub.f32 %v62, %v1341
    %1343 = vmatpush1.msra.mxu0 %v1342
    %1344 = vmatprep.subr.mxu0 0.0
    %v1345 = vand.u32 %v63, 4294901760
    %v1346 = vsub.f32 %v63, %v1345
    %1347 = vmatpush1.msra.mxu0 %v1346
    %1348 = vmatprep.subr.mxu0 0.0
    %v1349 = vand.u32 %v64, 4294901760
    %v1350 = vsub.f32 %v64, %v1349
    %1351 = vmatpush1.msra.mxu0 %v1350
    %1352 = vmatprep.subr.mxu0 0.0
    %v1353 = vand.u32 %v65, 4294901760
    %v1354 = vsub.f32 %v65, %v1353
    %1355 = vmatpush1.msra.mxu0 %v1354
    %1356 = vmatprep.subr.mxu0 0.0
    %v1357 = vand.u32 %v66, 4294901760
    %v1358 = vsub.f32 %v66, %v1357
    %1359 = vmatpush1.msra.mxu0 %v1358
    %1360 = vmatprep.subr.mxu0 0.0
    %v1361 = vand.u32 %v67, 4294901760
    %v1362 = vsub.f32 %v67, %v1361
    %1363 = vmatpush1.msra.mxu0 %v1362
    %1364 = vmatprep.subr.mxu0 0.0
    %v1365 = vand.u32 %v68, 4294901760
    %v1366 = vsub.f32 %v68, %v1365
    %1367 = vmatpush1.msra.mxu0 %v1366
    %1368 = vmatprep.subr.mxu0 0.0
    %v1369 = vand.u32 %v69, 4294901760
    %v1370 = vsub.f32 %v69, %v1369
    %1371 = vmatpush1.msra.mxu0 %v1370
    %1372 = vmatprep.subr.mxu0 0.0
    %v1373 = vand.u32 %v70, 4294901760
    %v1374 = vsub.f32 %v70, %v1373
    %1375 = vmatpush1.msra.mxu0 %v1374
    %1376 = vmatprep.subr.mxu0 0.0
    %v1377 = vand.u32 %v71, 4294901760
    %v1378 = vsub.f32 %v71, %v1377
    %1379 = vmatpush1.msra.mxu0 %v1378
    %1380 = vmatprep.subr.mxu0 0.0
    %v1381 = vand.u32 %v72, 4294901760
    %v1382 = vsub.f32 %v72, %v1381
    %1383 = vmatpush1.msra.mxu0 %v1382
    %1384 = vmatprep.subr.mxu0 0.0
    %v1385 = vand.u32 %v73, 4294901760
    %v1386 = vsub.f32 %v73, %v1385
    %1387 = vmatpush1.msra.mxu0 %v1386
    %1388 = vmatprep.subr.mxu0 0.0
    %v1389 = vand.u32 %v74, 4294901760
    %v1390 = vsub.f32 %v74, %v1389
    %1391 = vmatpush1.msra.mxu0 %v1390
    %1392 = vmatprep.subr.mxu0 0.0
    %v1393 = vand.u32 %v75, 4294901760
    %v1394 = vsub.f32 %v75, %v1393
    %1395 = vmatpush1.msra.mxu0 %v1394
    %1396 = vmatprep.subr.mxu0 0.0
    %v1397 = vand.u32 %v76, 4294901760
    %v1398 = vsub.f32 %v76, %v1397
    %1399 = vmatpush1.msra.mxu0 %v1398
    %1400 = vmatprep.subr.mxu0 0.0
    %v1401 = vand.u32 %v77, 4294901760
    %v1402 = vsub.f32 %v77, %v1401
    %1403 = vmatpush1.msra.mxu0 %v1402
    %1404 = vmatprep.subr.mxu0 0.0
    %v1405 = vand.u32 %v78, 4294901760
    %v1406 = vsub.f32 %v78, %v1405
    %1407 = vmatpush1.msra.mxu0 %v1406
    %1408 = vmatprep.subr.mxu0 0.0
    %v1409 = vand.u32 %v79, 4294901760
    %v1410 = vsub.f32 %v79, %v1409
    %1411 = vmatpush1.msra.mxu0 %v1410
    %1412 = vmatprep.subr.mxu0 0.0
    %v1413 = vand.u32 %v80, 4294901760
    %v1414 = vsub.f32 %v80, %v1413
    %1415 = vmatpush1.msra.mxu0 %v1414
    %1416 = vmatprep.subr.mxu0 0.0
    %v1417 = vand.u32 %v81, 4294901760
    %v1418 = vsub.f32 %v81, %v1417
    %1419 = vmatpush1.msra.mxu0 %v1418
    %1420 = vmatprep.subr.mxu0 0.0
    %v1421 = vand.u32 %v82, 4294901760
    %v1422 = vsub.f32 %v82, %v1421
    %1423 = vmatpush1.msra.mxu0 %v1422
    %v1424 = vand.u32 %v18, 4294901760
    %v1425 = vsub.f32 %v18, %v1424
    %1426 = vmatprep.mubr.f32.mxu0 %v1425
    %v1427 = vand.u32 %v17, 4294901760
    %v1428 = vsub.f32 %v17, %v1427
    %1429 = vmatmul.mubr.f32.gmra.mrb[0].mxu0 %v1428
    %v1430 = vpop.f32.mrb[0].mxu0
    %v1431 = vadd.f32 %v1293, %v1430
    %v1432 = vpop.f32.mrb[0].mxu0
    %1433 = vdwg.mxu0
    %1434 = vmatprep.subr.mxu0 0.0
    %v1435 = vand.u32 %v51, 4294901760
    %1436 = vmatpush1.msra.mxu0 %v1435
    %1437 = vmatprep.subr.mxu0 0.0
    %v1438 = vand.u32 %v52, 4294901760
    %1439 = vmatpush1.msra.mxu0 %v1438
    %1440 = vmatprep.subr.mxu0 0.0
    %v1441 = vand.u32 %v53, 4294901760
    %1442 = vmatpush1.msra.mxu0 %v1441
    %1443 = vmatprep.subr.mxu0 0.0
    %v1444 = vand.u32 %v54, 4294901760
    %1445 = vmatpush1.msra.mxu0 %v1444
    %1446 = vmatprep.subr.mxu0 0.0
    %v1447 = vand.u32 %v55, 4294901760
    %1448 = vmatpush1.msra.mxu0 %v1447
    %1449 = vmatprep.subr.mxu0 0.0
    %v1450 = vand.u32 %v56, 4294901760
    %1451 = vmatpush1.msra.mxu0 %v1450
    %1452 = vmatprep.subr.mxu0 0.0
    %v1453 = vand.u32 %v57, 4294901760
    %1454 = vmatpush1.msra.mxu0 %v1453
    %1455 = vmatprep.subr.mxu0 0.0
    %v1456 = vand.u32 %v58, 4294901760
    %1457 = vmatpush1.msra.mxu0 %v1456
    %1458 = vmatprep.subr.mxu0 0.0
    %v1459 = vand.u32 %v59, 4294901760
    %1460 = vmatpush1.msra.mxu0 %v1459
    %1461 = vmatprep.subr.mxu0 0.0
    %v1462 = vand.u32 %v60, 4294901760
    %1463 = vmatpush1.msra.mxu0 %v1462
    %1464 = vmatprep.subr.mxu0 0.0
    %v1465 = vand.u32 %v61, 4294901760
    %1466 = vmatpush1.msra.mxu0 %v1465
    %1467 = vmatprep.subr.mxu0 0.0
    %v1468 = vand.u32 %v62, 4294901760
    %1469 = vmatpush1.msra.mxu0 %v1468
    %1470 = vmatprep.subr.mxu0 0.0
    %v1471 = vand.u32 %v63, 4294901760
    %1472 = vmatpush1.msra.mxu0 %v1471
    %1473 = vmatprep.subr.mxu0 0.0
    %v1474 = vand.u32 %v64, 4294901760
    %1475 = vmatpush1.msra.mxu0 %v1474
    %1476 = vmatprep.subr.mxu0 0.0
    %v1477 = vand.u32 %v65, 4294901760
    %1478 = vmatpush1.msra.mxu0 %v1477
    %1479 = vmatprep.subr.mxu0 0.0
    %v1480 = vand.u32 %v66, 4294901760
    %1481 = vmatpush1.msra.mxu0 %v1480
    %1482 = vmatprep.subr.mxu0 0.0
    %v1483 = vand.u32 %v67, 4294901760
    %1484 = vmatpush1.msra.mxu0 %v1483
    %1485 = vmatprep.subr.mxu0 0.0
    %v1486 = vand.u32 %v68, 4294901760
    %1487 = vmatpush1.msra.mxu0 %v1486
    %1488 = vmatprep.subr.mxu0 0.0
    %v1489 = vand.u32 %v69, 4294901760
    %1490 = vmatpush1.msra.mxu0 %v1489
    %1491 = vmatprep.subr.mxu0 0.0
    %v1492 = vand.u32 %v70, 4294901760
    %1493 = vmatpush1.msra.mxu0 %v1492
    %1494 = vmatprep.subr.mxu0 0.0
    %v1495 = vand.u32 %v71, 4294901760
    %1496 = vmatpush1.msra.mxu0 %v1495
    %1497 = vmatprep.subr.mxu0 0.0
    %v1498 = vand.u32 %v72, 4294901760
    %1499 = vmatpush1.msra.mxu0 %v1498
    %1500 = vmatprep.subr.mxu0 0.0
    %v1501 = vand.u32 %v73, 4294901760
    %1502 = vmatpush1.msra.mxu0 %v1501
    %1503 = vmatprep.subr.mxu0 0.0
    %v1504 = vand.u32 %v74, 4294901760
    %1505 = vmatpush1.msra.mxu0 %v1504
    %1506 = vmatprep.subr.mxu0 0.0
    %v1507 = vand.u32 %v75, 4294901760
    %1508 = vmatpush1.msra.mxu0 %v1507
    %1509 = vmatprep.subr.mxu0 0.0
    %v1510 = vand.u32 %v76, 4294901760
    %1511 = vmatpush1.msra.mxu0 %v1510
    %1512 = vmatprep.subr.mxu0 0.0
    %v1513 = vand.u32 %v77, 4294901760
    %1514 = vmatpush1.msra.mxu0 %v1513
    %1515 = vmatprep.subr.mxu0 0.0
    %v1516 = vand.u32 %v78, 4294901760
    %1517 = vmatpush1.msra.mxu0 %v1516
    %1518 = vmatprep.subr.mxu0 0.0
    %v1519 = vand.u32 %v79, 4294901760
    %1520 = vmatpush1.msra.mxu0 %v1519
    %1521 = vmatprep.subr.mxu0 0.0
    %v1522 = vand.u32 %v80, 4294901760
    %1523 = vmatpush1.msra.mxu0 %v1522
    %1524 = vmatprep.subr.mxu0 0.0
    %v1525 = vand.u32 %v81, 4294901760
    %1526 = vmatpush1.msra.mxu0 %v1525
    %1527 = vmatprep.subr.mxu0 0.0
    %v1528 = vand.u32 %v82, 4294901760
    %1529 = vmatpush1.msra.mxu0 %v1528
    %v1530 = vand.u32 %v18, 4294901760
    %v1531 = vsub.f32 %v18, %v1530
    %v1532 = vand.u32 %v1531, 4294901760
    %1533 = vmatprep.mubr.f32.mxu0 %v1532
    %v1534 = vand.u32 %v17, 4294901760
    %v1535 = vsub.f32 %v17, %v1534
    %v1536 = vand.u32 %v1535, 4294901760
    %1537 = vmatmul.mubr.f32.gmra.mrb[0].mxu0 %v1536
    %v1538 = vpop.f32.mrb[0].mxu0
    %v1539 = vadd.f32 %v1431, %v1538
    %v1540 = vpop.f32.mrb[0].mxu0
    %1541 = vdwg.mxu0
    %1542 = vmatprep.subr.mxu0 0.0
    %v1543 = vand.u32 %v51, 4294901760
    %v1544 = vsub.f32 %v51, %v1543
    %v1545 = vand.u32 %v1544, 4294901760
    %1546 = vmatpush1.msra.mxu0 %v1545
    %1547 = vmatprep.subr.mxu0 0.0
    %v1548 = vand.u32 %v52, 4294901760
    %v1549 = vsub.f32 %v52, %v1548
    %v1550 = vand.u32 %v1549, 4294901760
    %1551 = vmatpush1.msra.mxu0 %v1550
    %1552 = vmatprep.subr.mxu0 0.0
    %v1553 = vand.u32 %v53, 4294901760
    %v1554 = vsub.f32 %v53, %v1553
    %v1555 = vand.u32 %v1554, 4294901760
    %1556 = vmatpush1.msra.mxu0 %v1555
    %1557 = vmatprep.subr.mxu0 0.0
    %v1558 = vand.u32 %v54, 4294901760
    %v1559 = vsub.f32 %v54, %v1558
    %v1560 = vand.u32 %v1559, 4294901760
    %1561 = vmatpush1.msra.mxu0 %v1560
    %1562 = vmatprep.subr.mxu0 0.0
    %v1563 = vand.u32 %v55, 4294901760
    %v1564 = vsub.f32 %v55, %v1563
    %v1565 = vand.u32 %v1564, 4294901760
    %1566 = vmatpush1.msra.mxu0 %v1565
    %1567 = vmatprep.subr.mxu0 0.0
    %v1568 = vand.u32 %v56, 4294901760
    %v1569 = vsub.f32 %v56, %v1568
    %v1570 = vand.u32 %v1569, 4294901760
    %1571 = vmatpush1.msra.mxu0 %v1570
    %1572 = vmatprep.subr.mxu0 0.0
    %v1573 = vand.u32 %v57, 4294901760
    %v1574 = vsub.f32 %v57, %v1573
    %v1575 = vand.u32 %v1574, 4294901760
    %1576 = vmatpush1.msra.mxu0 %v1575
    %1577 = vmatprep.subr.mxu0 0.0
    %v1578 = vand.u32 %v58, 4294901760
    %v1579 = vsub.f32 %v58, %v1578
    %v1580 = vand.u32 %v1579, 4294901760
    %1581 = vmatpush1.msra.mxu0 %v1580
    %1582 = vmatprep.subr.mxu0 0.0
    %v1583 = vand.u32 %v59, 4294901760
    %v1584 = vsub.f32 %v59, %v1583
    %v1585 = vand.u32 %v1584, 4294901760
    %1586 = vmatpush1.msra.mxu0 %v1585
    %1587 = vmatprep.subr.mxu0 0.0
    %v1588 = vand.u32 %v60, 4294901760
    %v1589 = vsub.f32 %v60, %v1588
    %v1590 = vand.u32 %v1589, 4294901760
    %1591 = vmatpush1.msra.mxu0 %v1590
    %1592 = vmatprep.subr.mxu0 0.0
    %v1593 = vand.u32 %v61, 4294901760
    %v1594 = vsub.f32 %v61, %v1593
    %v1595 = vand.u32 %v1594, 4294901760
    %1596 = vmatpush1.msra.mxu0 %v1595
    %1597 = vmatprep.subr.mxu0 0.0
    %v1598 = vand.u32 %v62, 4294901760
    %v1599 = vsub.f32 %v62, %v1598
    %v1600 = vand.u32 %v1599, 4294901760
    %1601 = vmatpush1.msra.mxu0 %v1600
    %1602 = vmatprep.subr.mxu0 0.0
    %v1603 = vand.u32 %v63, 4294901760
    %v1604 = vsub.f32 %v63, %v1603
    %v1605 = vand.u32 %v1604, 4294901760
    %1606 = vmatpush1.msra.mxu0 %v1605
    %1607 = vmatprep.subr.mxu0 0.0
    %v1608 = vand.u32 %v64, 4294901760
    %v1609 = vsub.f32 %v64, %v1608
    %v1610 = vand.u32 %v1609, 4294901760
    %1611 = vmatpush1.msra.mxu0 %v1610
    %1612 = vmatprep.subr.mxu0 0.0
    %v1613 = vand.u32 %v65, 4294901760
    %v1614 = vsub.f32 %v65, %v1613
    %v1615 = vand.u32 %v1614, 4294901760
    %1616 = vmatpush1.msra.mxu0 %v1615
    %1617 = vmatprep.subr.mxu0 0.0
    %v1618 = vand.u32 %v66, 4294901760
    %v1619 = vsub.f32 %v66, %v1618
    %v1620 = vand.u32 %v1619, 4294901760
    %1621 = vmatpush1.msra.mxu0 %v1620
    %1622 = vmatprep.subr.mxu0 0.0
    %v1623 = vand.u32 %v67, 4294901760
    %v1624 = vsub.f32 %v67, %v1623
    %v1625 = vand.u32 %v1624, 4294901760
    %1626 = vmatpush1.msra.mxu0 %v1625
    %1627 = vmatprep.subr.mxu0 0.0
    %v1628 = vand.u32 %v68, 4294901760
    %v1629 = vsub.f32 %v68, %v1628
    %v1630 = vand.u32 %v1629, 4294901760
    %1631 = vmatpush1.msra.mxu0 %v1630
    %1632 = vmatprep.subr.mxu0 0.0
    %v1633 = vand.u32 %v69, 4294901760
    %v1634 = vsub.f32 %v69, %v1633
    %v1635 = vand.u32 %v1634, 4294901760
    %1636 = vmatpush1.msra.mxu0 %v1635
    %1637 = vmatprep.subr.mxu0 0.0
    %v1638 = vand.u32 %v70, 4294901760
    %v1639 = vsub.f32 %v70, %v1638
    %v1640 = vand.u32 %v1639, 4294901760
    %1641 = vmatpush1.msra.mxu0 %v1640
    %1642 = vmatprep.subr.mxu0 0.0
    %v1643 = vand.u32 %v71, 4294901760
    %v1644 = vsub.f32 %v71, %v1643
    %v1645 = vand.u32 %v1644, 4294901760
    %1646 = vmatpush1.msra.mxu0 %v1645
    %1647 = vmatprep.subr.mxu0 0.0
    %v1648 = vand.u32 %v72, 4294901760
    %v1649 = vsub.f32 %v72, %v1648
    %v1650 = vand.u32 %v1649, 4294901760
    %1651 = vmatpush1.msra.mxu0 %v1650
    %1652 = vmatprep.subr.mxu0 0.0
    %v1653 = vand.u32 %v73, 4294901760
    %v1654 = vsub.f32 %v73, %v1653
    %v1655 = vand.u32 %v1654, 4294901760
    %1656 = vmatpush1.msra.mxu0 %v1655
    %1657 = vmatprep.subr.mxu0 0.0
    %v1658 = vand.u32 %v74, 4294901760
    %v1659 = vsub.f32 %v74, %v1658
    %v1660 = vand.u32 %v1659, 4294901760
    %1661 = vmatpush1.msra.mxu0 %v1660
    %1662 = vmatprep.subr.mxu0 0.0
    %v1663 = vand.u32 %v75, 4294901760
    %v1664 = vsub.f32 %v75, %v1663
    %v1665 = vand.u32 %v1664, 4294901760
    %1666 = vmatpush1.msra.mxu0 %v1665
    %1667 = vmatprep.subr.mxu0 0.0
    %v1668 = vand.u32 %v76, 4294901760
    %v1669 = vsub.f32 %v76, %v1668
    %v1670 = vand.u32 %v1669, 4294901760
    %1671 = vmatpush1.msra.mxu0 %v1670
    %1672 = vmatprep.subr.mxu0 0.0
    %v1673 = vand.u32 %v77, 4294901760
    %v1674 = vsub.f32 %v77, %v1673
    %v1675 = vand.u32 %v1674, 4294901760
    %1676 = vmatpush1.msra.mxu0 %v1675
    %1677 = vmatprep.subr.mxu0 0.0
    %v1678 = vand.u32 %v78, 4294901760
    %v1679 = vsub.f32 %v78, %v1678
    %v1680 = vand.u32 %v1679, 4294901760
    %1681 = vmatpush1.msra.mxu0 %v1680
    %1682 = vmatprep.subr.mxu0 0.0
    %v1683 = vand.u32 %v79, 4294901760
    %v1684 = vsub.f32 %v79, %v1683
    %v1685 = vand.u32 %v1684, 4294901760
    %1686 = vmatpush1.msra.mxu0 %v1685
    %1687 = vmatprep.subr.mxu0 0.0
    %v1688 = vand.u32 %v80, 4294901760
    %v1689 = vsub.f32 %v80, %v1688
    %v1690 = vand.u32 %v1689, 4294901760
    %1691 = vmatpush1.msra.mxu0 %v1690
    %1692 = vmatprep.subr.mxu0 0.0
    %v1693 = vand.u32 %v81, 4294901760
    %v1694 = vsub.f32 %v81, %v1693
    %v1695 = vand.u32 %v1694, 4294901760
    %1696 = vmatpush1.msra.mxu0 %v1695
    %1697 = vmatprep.subr.mxu0 0.0
    %v1698 = vand.u32 %v82, 4294901760
    %v1699 = vsub.f32 %v82, %v1698
    %v1700 = vand.u32 %v1699, 4294901760
    %1701 = vmatpush1.msra.mxu0 %v1700
    %v1702 = vand.u32 %v18, 4294901760
    %1703 = vmatprep.mubr.f32.mxu0 %v1702
    %v1704 = vand.u32 %v17, 4294901760
    %1705 = vmatmul.mubr.f32.gmra.mrb[0].mxu0 %v1704
    %v1706 = vpop.f32.mrb[0].mxu0
    %v1707 = vadd.f32 %v1539, %v1706
    %v1708 = vpop.f32.mrb[0].mxu0
    %1709 = vdwg.mxu0
    %1710 = vmatprep.subr.mxu0 0.0
    %v1711 = vand.u32 %v51, 4294901760
    %1712 = vmatpush1.msra.mxu0 %v1711
    %1713 = vmatprep.subr.mxu0 0.0
    %v1714 = vand.u32 %v52, 4294901760
    %1715 = vmatpush1.msra.mxu0 %v1714
    %1716 = vmatprep.subr.mxu0 0.0
    %v1717 = vand.u32 %v53, 4294901760
    %1718 = vmatpush1.msra.mxu0 %v1717
    %1719 = vmatprep.subr.mxu0 0.0
    %v1720 = vand.u32 %v54, 4294901760
    %1721 = vmatpush1.msra.mxu0 %v1720
    %1722 = vmatprep.subr.mxu0 0.0
    %v1723 = vand.u32 %v55, 4294901760
    %1724 = vmatpush1.msra.mxu0 %v1723
    %1725 = vmatprep.subr.mxu0 0.0
    %v1726 = vand.u32 %v56, 4294901760
    %1727 = vmatpush1.msra.mxu0 %v1726
    %1728 = vmatprep.subr.mxu0 0.0
    %v1729 = vand.u32 %v57, 4294901760
    %1730 = vmatpush1.msra.mxu0 %v1729
    %1731 = vmatprep.subr.mxu0 0.0
    %v1732 = vand.u32 %v58, 4294901760
    %1733 = vmatpush1.msra.mxu0 %v1732
    %1734 = vmatprep.subr.mxu0 0.0
    %v1735 = vand.u32 %v59, 4294901760
    %1736 = vmatpush1.msra.mxu0 %v1735
    %1737 = vmatprep.subr.mxu0 0.0
    %v1738 = vand.u32 %v60, 4294901760
    %1739 = vmatpush1.msra.mxu0 %v1738
    %1740 = vmatprep.subr.mxu0 0.0
    %v1741 = vand.u32 %v61, 4294901760
    %1742 = vmatpush1.msra.mxu0 %v1741
    %1743 = vmatprep.subr.mxu0 0.0
    %v1744 = vand.u32 %v62, 4294901760
    %1745 = vmatpush1.msra.mxu0 %v1744
    %1746 = vmatprep.subr.mxu0 0.0
    %v1747 = vand.u32 %v63, 4294901760
    %1748 = vmatpush1.msra.mxu0 %v1747
    %1749 = vmatprep.subr.mxu0 0.0
    %v1750 = vand.u32 %v64, 4294901760
    %1751 = vmatpush1.msra.mxu0 %v1750
    %1752 = vmatprep.subr.mxu0 0.0
    %v1753 = vand.u32 %v65, 4294901760
    %1754 = vmatpush1.msra.mxu0 %v1753
    %1755 = vmatprep.subr.mxu0 0.0
    %v1756 = vand.u32 %v66, 4294901760
    %1757 = vmatpush1.msra.mxu0 %v1756
    %1758 = vmatprep.subr.mxu0 0.0
    %v1759 = vand.u32 %v67, 4294901760
    %1760 = vmatpush1.msra.mxu0 %v1759
    %1761 = vmatprep.subr.mxu0 0.0
    %v1762 = vand.u32 %v68, 4294901760
    %1763 = vmatpush1.msra.mxu0 %v1762
    %1764 = vmatprep.subr.mxu0 0.0
    %v1765 = vand.u32 %v69, 4294901760
    %1766 = vmatpush1.msra.mxu0 %v1765
    %1767 = vmatprep.subr.mxu0 0.0
    %v1768 = vand.u32 %v70, 4294901760
    %1769 = vmatpush1.msra.mxu0 %v1768
    %1770 = vmatprep.subr.mxu0 0.0
    %v1771 = vand.u32 %v71, 4294901760
    %1772 = vmatpush1.msra.mxu0 %v1771
    %1773 = vmatprep.subr.mxu0 0.0
    %v1774 = vand.u32 %v72, 4294901760
    %1775 = vmatpush1.msra.mxu0 %v1774
    %1776 = vmatprep.subr.mxu0 0.0
    %v1777 = vand.u32 %v73, 4294901760
    %1778 = vmatpush1.msra.mxu0 %v1777
    %1779 = vmatprep.subr.mxu0 0.0
    %v1780 = vand.u32 %v74, 4294901760
    %1781 = vmatpush1.msra.mxu0 %v1780
    %1782 = vmatprep.subr.mxu0 0.0
    %v1783 = vand.u32 %v75, 4294901760
    %1784 = vmatpush1.msra.mxu0 %v1783
    %1785 = vmatprep.subr.mxu0 0.0
    %v1786 = vand.u32 %v76, 4294901760
    %1787 = vmatpush1.msra.mxu0 %v1786
    %1788 = vmatprep.subr.mxu0 0.0
    %v1789 = vand.u32 %v77, 4294901760
    %1790 = vmatpush1.msra.mxu0 %v1789
    %1791 = vmatprep.subr.mxu0 0.0
    %v1792 = vand.u32 %v78, 4294901760
    %1793 = vmatpush1.msra.mxu0 %v1792
    %1794 = vmatprep.subr.mxu0 0.0
    %v1795 = vand.u32 %v79, 4294901760
    %1796 = vmatpush1.msra.mxu0 %v1795
    %1797 = vmatprep.subr.mxu0 0.0
    %v1798 = vand.u32 %v80, 4294901760
    %1799 = vmatpush1.msra.mxu0 %v1798
    %1800 = vmatprep.subr.mxu0 0.0
    %v1801 = vand.u32 %v81, 4294901760
    %1802 = vmatpush1.msra.mxu0 %v1801
    %1803 = vmatprep.subr.mxu0 0.0
    %v1804 = vand.u32 %v82, 4294901760
    %1805 = vmatpush1.msra.mxu0 %v1804
    %v1806 = vand.u32 %v18, 4294901760
    %1807 = vmatprep.mubr.f32.mxu0 %v1806
    %v1808 = vand.u32 %v17, 4294901760
    %1809 = vmatmul.mubr.f32.gmra.mrb[0].mxu0 %v1808
    %v1810 = vpop.f32.mrb[0].mxu0
    %v1811 = vadd.f32 %v1707, %v1810
    %v1812 = vpop.f32.mrb[0].mxu0
    %1813 = vdwg.mxu0
    %vm1814 = vcmask 80896
    %1815 = vst.msk [vmem:[#allocation2] sm:$0xff] %vm1814, %v1811
    // Predicated region
    $region14: #{tpu_custom_call.1} parent=1 // pred_check
      _
    $region15: #{tpu_custom_call.1} parent=1 // pred_check_branch
      %1817 = sbr.rel (0) target = $region17
    $region16: #{tpu_custom_call.1} parent=1 // pred_region
      %s1819 = ssub.s32 128, 128
      %1820 = vsyncadd [#allocation3], %s1819
      %s1822 = sshll.u32 [#allocation2], 4
      %s1823 = int_to_ptr.vmem [resolvable:$true] %s1822
      %1825 = dma.vmem_to_hbm [thread:$0]  %s1823, 128, %s3, [#allocation3]
    $region17: #{tpu_custom_call.1} parent=1 // pred_fallthru
      _
    // Predicated region
    $region18: #{tpu_custom_call.1} parent=1 // pred_check
      _
    $region19: #{tpu_custom_call.1} parent=1 // pred_check_branch
      %1827 = sbr.rel (0) target = $region21
    $region20: #{tpu_custom_call.1} parent=1 // pred_region
      %1828 = dma.done [#allocation3], 128
    $region21: #{tpu_custom_call.1} parent=1 // pred_fallthru
      _
    %1829 = vsyncpa [#allocation3], 1

</llo_original>
